<compile_context>
chip_gen: v7x
topology: tpu7x:2x2x1
jax: 0.10.0
libtpu: 0.0.40
codegen_flags: <defaults>
</compile_context>

<pallas_src>
import functools

import jax
import jax.numpy as jnp
from jax.experimental import pallas as pl
from jax.experimental.pallas import tpu as pltpu

EPS = 1e-5
LANE = 128

# conv1 im2col tap order: CENTER TAP FIRST so that p1[:, :Cin] is exactly the
# 1x1-projection / identity shortcut operand (no separate xs input needed).
TAP_ORDER = ((1, 1), (0, 0), (0, 1), (0, 2), (1, 0), (1, 2), (2, 0), (2, 1), (2, 2))


def _round_up(v, m):
    return ((v + m - 1) // m) * m


# ------------------------------ Pallas kernel --------------------------------

def _bn_train(y, gamma, beta):
    """BatchNorm with batch statistics (biased var), single pass, f32."""
    m = y.shape[0]
    inv_m = 1.0 / m
    mean = jnp.sum(y, axis=0, keepdims=True) * inv_m
    ex2 = jnp.sum(y * y, axis=0, keepdims=True) * inv_m
    var = jnp.maximum(ex2 - mean * mean, 0.0)
    return (y - mean) * jax.lax.rsqrt(var + EPS) * gamma + beta


def _fused_block_kernel(p1_ref, w1_ref, w2_ref, wp_ref, aff_ref, o_ref, h1s_ref,
                        *, n_imgs, ho, wo, padr, cp, use_projection):
    f32 = jnp.float32
    bf16 = jnp.bfloat16
    howo = ho * wo
    m_rows = n_imgs * howo
    rtot = h1s_ref.shape[1]

    # Hoist affine params once (rows of the small (8, Cp) VMEM slab).
    g1, b1 = aff_ref[0:1, :], aff_ref[1:2, :]
    g2, b2 = aff_ref[2:3, :], aff_ref[3:4, :]
    gp, bp = aff_ref[4:5, :], aff_ref[5:6, :]

    # ---- conv1 (im2col matmul, bf16 -> f32 acc) + BN1 (global batch stats) + ReLU
    y1 = jnp.dot(p1_ref[...], w1_ref[...], preferred_element_type=f32)
    h1 = jnp.maximum(_bn_train(y1, g1, b1), 0.0)          # (M, Cp) f32, VMEM-resident
    h1r = h1.reshape(n_imgs, howo, cp)                    # (N, Ho*Wo, Cp)

    # ---- build the dw-expanded, row-padded h1 scratch for conv2 -------------
    # Scratch layout: (N, padr + Ho*Wo + padr, 3*Cp).  Lane block b = dw+1 holds
    # h1 shifted by dw along the flattened row dim (written at row offset
    # padr - dw) with the column-boundary rows zeroed; the zero pad rows absorb
    # the dh = +-1 row offsets at image boundaries.  Only the pad bands are
    # re-zeroed (the interior is fully overwritten below).
    h1s_ref[:, 0:padr + 1, :] = jnp.zeros((n_imgs, padr + 1, 3 * cp), f32)
    h1s_ref[:, padr + howo - 1:rtot, :] = jnp.zeros(
        (n_imgs, rtot - (padr + howo - 1), 3 * cp), f32)

    jj = jax.lax.broadcasted_iota(jnp.int32, (1, howo, 1), 1) % wo
    # dw = -1 block: source column Wo-1 must not leak into the next row.
    h1s_ref[:, padr + 1:padr + 1 + howo, 0:cp] = jnp.where(jj != wo - 1, h1r, 0.0)
    # dw = 0 block: no mask.
    h1s_ref[:, padr:padr + howo, cp:2 * cp] = h1r
    # dw = +1 block: source column 0 must not leak into the previous row.
    h1s_ref[:, padr - 1:padr - 1 + howo, 2 * cp:3 * cp] = jnp.where(jj != 0, h1r, 0.0)

    # ---- conv2 (3x3, stride 1, pad 1): 3 grouped MXU matmuls with K = 3*Cp ----
    def tap_group(dh):
        t = h1s_ref[:, padr + dh * wo: padr + dh * wo + howo, :]
        return t.reshape(m_rows, 3 * cp).astype(bf16)

    acc = jnp.dot(tap_group(-1), w2_ref[0], preferred_element_type=f32)
    acc = acc + jnp.dot(tap_group(0), w2_ref[1], preferred_element_type=f32)
    acc = acc + jnp.dot(tap_group(1), w2_ref[2], preferred_element_type=f32)
    y2 = _bn_train(acc, g2, b2)

    # ---- shortcut (center tap of p1 == x at the strided output positions) ----
    if use_projection:                                    # 1x1 conv (stride s) + BN
        ys = jnp.dot(p1_ref[...], wp_ref[...], preferred_element_type=f32)
        sc = _bn_train(ys, gp, bp)
    else:                                                 # identity residual (bf16)
        sc = p1_ref[:, :cp].astype(f32)

    o_ref[...] = jnp.maximum(y2 + sc, 0.0)


# -------------------------------- JAX glue -----------------------------------

def _vmem_spec():
    return pl.BlockSpec(memory_space=pltpu.MemorySpace.VMEM)


def _pad2d(a, rows, cols):
    return jnp.pad(a, ((0, rows - a.shape[0]), (0, cols - a.shape[1])))


def _pad_vec(v, n, fill):
    return jnp.pad(v, (0, n - v.shape[0]), constant_values=fill)


def _im2col3x3(x_nhwc, stride):
    """3x3 pad-1 patches -> (N*Ho*Wo, 9*C), tap order = TAP_ORDER (center first)."""
    n, h, w, c = x_nhwc.shape
    xp = jnp.pad(x_nhwc, ((0, 0), (1, 1), (1, 1), (0, 0)))
    ho = (h - 1) // stride + 1
    wo = (w - 1) // stride + 1
    cols = [xp[:, kh:kh + stride * ho:stride, kw:kw + stride * wo:stride, :]
            for (kh, kw) in TAP_ORDER]
    p = jnp.stack(cols, axis=3)                           # (N, Ho, Wo, 9, C)
    return p.reshape(n * ho * wo, 9 * c), (n, ho, wo)


@functools.partial(jax.jit, static_argnames=("strides", "use_projection"))
def standard_block_forward(x_nchw, params, strides, use_projection):
    x = jnp.transpose(x_nchw, (0, 2, 3, 1)).astype(jnp.float32)   # NCHW -> NHWC
    n, h, w, cin = x.shape
    filters = params["w1"].shape[0]

    cp = _round_up(filters, LANE)           # padded Cout (lane dim everywhere)
    k1p = _round_up(9 * cin, LANE)          # padded conv1 contraction dim

    p1, (n_, ho, wo) = _im2col3x3(x, strides)
    howo = ho * wo
    m_rows = n_ * howo
    p1 = _pad2d(p1, m_rows, k1p).astype(jnp.bfloat16)

    # conv1 weights in the same (center-first) tap order: (9*Cin, Cout) padded.
    w1_blocks = [jnp.transpose(params["w1"][:, :, kh, kw]) for (kh, kw) in TAP_ORDER]
    w1m = _pad2d(jnp.concatenate(w1_blocks, axis=0), k1p, cp).astype(jnp.bfloat16)

    # conv2 weights grouped per dh (kh): (3, 3*Cp, Cp), rows ordered (kw, cin).
    w2g = jnp.transpose(params["w2"], (2, 3, 1, 0))        # (kh, kw, cin, cout)
    w2g = jnp.pad(w2g, ((0, 0), (0, 0), (0, cp - filters), (0, cp - filters)))
    w2g = w2g.reshape(3, 3 * cp, cp).astype(jnp.bfloat16)

    if use_projection:
        # 1x1 projection applied to the center tap: weights live in rows [0:Cin).
        wpm = _pad2d(jnp.transpose(params["wp"][:, :, 0, 0]), k1p, cp)
        wpm = wpm.astype(jnp.bfloat16)
        gp, bp = params["gp"], params["bp"]
    else:
        assert strides == 1 and cin == filters, \
            "identity shortcut requires strides == 1 and cin == filters"
        wpm = jnp.zeros((8, cp), jnp.bfloat16)             # unused dummy
        gp = jnp.ones((filters,), jnp.float32)
        bp = jnp.zeros((filters,), jnp.float32)

    # Affine slab: rows = g1, b1, g2, b2, gp, bp (+2 pad rows). Padded channels
    # get gamma=1 / beta=0 so they stay exactly 0 through BN/ReLU.
    aff = jnp.stack([
        _pad_vec(params["g1"], cp, 1.0), _pad_vec(params["b1"], cp, 0.0),
        _pad_vec(params["g2"], cp, 1.0), _pad_vec(params["b2"], cp, 0.0),
        _pad_vec(gp, cp, 1.0), _pad_vec(bp, cp, 0.0),
        jnp.zeros((cp,), jnp.float32), jnp.zeros((cp,), jnp.float32),
    ]).astype(jnp.float32)

    padr = _round_up(wo, 8)                 # per-image zero-row pad (>= Wo, aligned)
    rtot = 2 * padr + howo

    kernel = functools.partial(_fused_block_kernel, n_imgs=n_, ho=ho, wo=wo,
                               padr=padr, cp=cp, use_projection=use_projection)

    flops = 2 * m_rows * k1p * cp + 3 * (2 * m_rows * (3 * cp) * cp)
    if use_projection:
        flops += 2 * m_rows * k1p * cp
    bytes_in = (p1.size + w1m.size + w2g.size + wpm.size) * 2 + aff.size * 4
    bytes_out = m_rows * cp * 4
    scratch_bytes = n_ * rtot * 3 * cp * 4
    vmem_need = bytes_in + bytes_out + scratch_bytes + 6 * m_rows * cp * 4
    vmem_limit = int(min(48 * 2 ** 20, max(32 * 2 ** 20, 2 * vmem_need)))

    out = pl.pallas_call(
        kernel,
        out_shape=jax.ShapeDtypeStruct((m_rows, cp), jnp.float32),
        in_specs=[_vmem_spec()] * 5,
        out_specs=_vmem_spec(),
        scratch_shapes=[pltpu.VMEM((n_, rtot, 3 * cp), jnp.float32)],
        compiler_params=pltpu.CompilerParams(vmem_limit_bytes=vmem_limit),
        cost_estimate=pl.CostEstimate(flops=flops, transcendentals=3 * cp,
                                      bytes_accessed=bytes_in + bytes_out),
    )(p1, w1m, w2g, wpm, aff)

    out = out[:, :filters].reshape(n_, ho, wo, filters)
    return jnp.transpose(out, (0, 3, 1, 2))                # NHWC -> NCHW


# ---------------------------- pure-JAX reference -----------------------------

def _ref_forward(x, params, strides, use_projection):
    def conv(a, w, stride, pad):
        return jax.lax.conv_general_dilated(
            a, w, (stride, stride), ((pad, pad), (pad, pad)),
            dimension_numbers=("NCHW", "OIHW", "NCHW"))

    def bn(a, g, b):
        mean = a.mean(axis=(0, 2, 3), keepdims=True)
        var = ((a - mean) ** 2).mean(axis=(0, 2, 3), keepdims=True)
        return (a - mean) * jax.lax.rsqrt(var + EPS) * g.reshape(1, -1, 1, 1) \
            + b.reshape(1, -1, 1, 1)

    h1 = jax.nn.relu(bn(conv(x, params["w1"], strides, 1), params["g1"], params["b1"]))
    y = bn(conv(h1, params["w2"], 1, 1), params["g2"], params["b2"])
    if use_projection:
        y = y + bn(conv(x, params["wp"], strides, 0), params["gp"], params["bp"])
    else:
        y = y + x
    return jax.nn.relu(y)


# ----------------------------------- main -------------------------------------

if __name__ == "__main__":
    key = jax.random.PRNGKey(0)
    k = jax.random.split(key, 12)

    # --- projection-shortcut case (strides != 1), matches the PyTorch module ---
    N, C_IN, H, W = 2, 4, 16, 16          # first_num_filters = 4
    FILTERS, STRIDES = 8, 2

    x = jax.random.normal(k[0], (N, C_IN, H, W), jnp.float32)
    params = {
        "w1": 0.1 * jax.random.normal(k[1], (FILTERS, C_IN, 3, 3), jnp.float32),
        "w2": 0.1 * jax.random.normal(k[2], (FILTERS, FILTERS, 3, 3), jnp.float32),
        "wp": 0.1 * jax.random.normal(k[3], (FILTERS, C_IN, 1, 1), jnp.float32),
        "g1": 1.0 + 0.1 * jax.random.normal(k[4], (FILTERS,), jnp.float32),
        "b1": 0.1 * jax.random.normal(k[5], (FILTERS,), jnp.float32),
        "g2": 1.0 + 0.1 * jax.random.normal(k[6], (FILTERS,), jnp.float32),
        "b2": 0.1 * jax.random.normal(k[7], (FILTERS,), jnp.float32),
        "gp": 1.0 + 0.1 * jax.random.normal(k[8], (FILTERS,), jnp.float32),
        "bp": 0.1 * jax.random.normal(k[9], (FILTERS,), jnp.float32),
    }

    out = jax.block_until_ready(standard_block_forward(x, params, STRIDES, True))
    ref = _ref_forward(x, params, STRIDES, True)
    assert out.shape == (N, FILTERS, H // STRIDES, W // STRIDES), out.shape
    err = float(jnp.max(jnp.abs(out - ref)))
    assert err < 5e-2, err      # bf16 MXU operands vs. pure-f32 reference

    # --- identity-shortcut case (strides == 1, cin == filters) ---
    F2 = 4
    x2 = jax.random.normal(k[10], (N, F2, H, W), jnp.float32)
    params2 = {
        "w1": 0.1 * jax.random.normal(k[1], (F2, F2, 3, 3), jnp.float32),
        "w2": 0.1 * jax.random.normal(k[2], (F2, F2, 3, 3), jnp.float32),
        "g1": 1.0 + 0.1 * jax.random.normal(k[4], (F2,), jnp.float32),
        "b1": 0.1 * jax.random.normal(k[5], (F2,), jnp.float32),
        "g2": 1.0 + 0.1 * jax.random.normal(k[6], (F2,), jnp.float32),
        "b2": 0.1 * jax.random.normal(k[7], (F2,), jnp.float32),
    }
    out2 = jax.block_until_ready(standard_block_forward(x2, params2, 1, False))
    ref2 = _ref_forward(x2, params2, 1, False)
    assert out2.shape == (N, F2, H, W), out2.shape
    err2 = float(jnp.max(jnp.abs(out2 - ref2)))
    assert err2 < 5e-2, err2

    print("KERNEL_OK")
</pallas_src>

<mosaic_0001>
module attributes {stable_mosaic.version = 11 : i64} {
  func.func @_fused_block_kernel(%arg0: memref<128x128xbf16, #tpu.memory_space<vmem>>, %arg1: memref<128x128xbf16, #tpu.memory_space<vmem>>, %arg2: memref<3x384x128xbf16, #tpu.memory_space<vmem>>, %arg3: memref<128x128xbf16, #tpu.memory_space<vmem>>, %arg4: memref<8x128xf32, #tpu.memory_space<vmem>>, %arg5: memref<128x128xf32, #tpu.memory_space<vmem>>, %arg6: memref<2x80x384xf32, #tpu.memory_space<vmem>>) attributes {dimension_semantics = [], scalar_prefetch = 0 : i64, scratch_operands = 1 : i64, tpu.core_type = #tpu.core_type<tc>} {
    %c0 = arith.constant 0 : index
    %c0_0 = arith.constant 0 : index
    %0 = vector.load %arg4[%c0, %c0_0] : memref<8x128xf32, #tpu.memory_space<vmem>>, vector<1x128xf32>
    %c1 = arith.constant 1 : index
    %c0_1 = arith.constant 0 : index
    %1 = vector.load %arg4[%c1, %c0_1] : memref<8x128xf32, #tpu.memory_space<vmem>>, vector<1x128xf32>
    %c2 = arith.constant 2 : index
    %c0_2 = arith.constant 0 : index
    %2 = vector.load %arg4[%c2, %c0_2] : memref<8x128xf32, #tpu.memory_space<vmem>>, vector<1x128xf32>
    %c3 = arith.constant 3 : index
    %c0_3 = arith.constant 0 : index
    %3 = vector.load %arg4[%c3, %c0_3] : memref<8x128xf32, #tpu.memory_space<vmem>>, vector<1x128xf32>
    %c4 = arith.constant 4 : index
    %c0_4 = arith.constant 0 : index
    %4 = vector.load %arg4[%c4, %c0_4] : memref<8x128xf32, #tpu.memory_space<vmem>>, vector<1x128xf32>
    %c5 = arith.constant 5 : index
    %c0_5 = arith.constant 0 : index
    %5 = vector.load %arg4[%c5, %c0_5] : memref<8x128xf32, #tpu.memory_space<vmem>>, vector<1x128xf32>
    %c0_6 = arith.constant 0 : index
    %c0_7 = arith.constant 0 : index
    %6 = vector.load %arg0[%c0_6, %c0_7] : memref<128x128xbf16, #tpu.memory_space<vmem>>, vector<128x128xbf16>
    %c0_8 = arith.constant 0 : index
    %c0_9 = arith.constant 0 : index
    %7 = vector.load %arg1[%c0_8, %c0_9] : memref<128x128xbf16, #tpu.memory_space<vmem>>, vector<128x128xbf16>
    %cst = arith.constant dense<0.000000e+00> : vector<128x128xf32>
    %8 = tpu.matmul %6, %7, %cst {dimension_numbers = #tpu.dot_dimension_numbers<[1], [0], [0], [1], [0, 0, 1, 1], [], []>} : vector<128x128xbf16>, vector<128x128xbf16>, vector<128x128xf32> -> vector<128x128xf32>
    %cst_10 = arith.constant dense<0.000000e+00> : vector<128xf32>
    %9 = vector.multi_reduction <add>, %8, %cst_10 [0] : vector<128x128xf32> to vector<128xf32>
    %10 = vector.shape_cast %9 : vector<128xf32> to vector<1x128xf32>
    %cst_11 = arith.constant 7.812500e-03 : f32
    %11 = vector.broadcast %cst_11 : f32 to vector<1x128xf32>
    %12 = arith.mulf %10, %11 : vector<1x128xf32>
    %13 = arith.mulf %8, %8 : vector<128x128xf32>
    %cst_12 = arith.constant dense<0.000000e+00> : vector<128xf32>
    %14 = vector.multi_reduction <add>, %13, %cst_12 [0] : vector<128x128xf32> to vector<128xf32>
    %15 = vector.shape_cast %14 : vector<128xf32> to vector<1x128xf32>
    %cst_13 = arith.constant 7.812500e-03 : f32
    %16 = vector.broadcast %cst_13 : f32 to vector<1x128xf32>
    %17 = arith.mulf %15, %16 : vector<1x128xf32>
    %18 = arith.mulf %12, %12 : vector<1x128xf32>
    %19 = arith.subf %17, %18 : vector<1x128xf32>
    %cst_14 = arith.constant 0.000000e+00 : f32
    %20 = vector.broadcast %cst_14 : f32 to vector<1x128xf32>
    %21 = arith.maximumf %19, %20 : vector<1x128xf32>
    %22 = vector.broadcast %12 : vector<1x128xf32> to vector<128x128xf32>
    %23 = arith.subf %8, %22 : vector<128x128xf32>
    %cst_15 = arith.constant 9.99999974E-6 : f32
    %24 = vector.broadcast %cst_15 : f32 to vector<1x128xf32>
    %25 = arith.addf %21, %24 : vector<1x128xf32>
    %26 = math.rsqrt %25 : vector<1x128xf32>
    %27 = vector.broadcast %26 : vector<1x128xf32> to vector<128x128xf32>
    %28 = arith.mulf %23, %27 : vector<128x128xf32>
    %29 = vector.broadcast %0 : vector<1x128xf32> to vector<128x128xf32>
    %30 = arith.mulf %28, %29 : vector<128x128xf32>
    %31 = vector.broadcast %1 : vector<1x128xf32> to vector<128x128xf32>
    %32 = arith.addf %30, %31 : vector<128x128xf32>
    %cst_16 = arith.constant 0.000000e+00 : f32
    %33 = vector.broadcast %cst_16 : f32 to vector<128x128xf32>
    %34 = arith.maximumf %32, %33 : vector<128x128xf32>
    %35 = vector.shape_cast %34 : vector<128x128xf32> to vector<2x64x128xf32>
    %cst_17 = arith.constant 0.000000e+00 : f32
    %36 = vector.broadcast %cst_17 : f32 to vector<2x9x384xf32>
    %c0_18 = arith.constant 0 : index
    %c0_19 = arith.constant 0 : index
    %c0_20 = arith.constant 0 : index
    %37 = vector.load %arg6[%c0_18, %c0_19, %c0_20] : memref<2x80x384xf32, #tpu.memory_space<vmem>>, vector<2x9x384xf32>
    tpu.vector_store %arg6[%c0_18, %c0_19, %c0_20], %36 {strides = array<i32>} : memref<2x80x384xf32, #tpu.memory_space<vmem>>, vector<2x9x384xf32>,
    %cst_21 = arith.constant 0.000000e+00 : f32
    %38 = vector.broadcast %cst_21 : f32 to vector<2x9x384xf32>
    %c0_22 = arith.constant 0 : index
    %c71 = arith.constant 71 : index
    %c0_23 = arith.constant 0 : index
    %39 = vector.load %arg6[%c0_22, %c71, %c0_23] : memref<2x80x384xf32, #tpu.memory_space<vmem>>, vector<2x9x384xf32>
    tpu.vector_store %arg6[%c0_22, %c71, %c0_23], %38 {strides = array<i32>} : memref<2x80x384xf32, #tpu.memory_space<vmem>>, vector<2x9x384xf32>,
    %40 = tpu.iota {dimensions = array<i32: 1>} : vector<1x64x1xi32>
    %c8_i32 = arith.constant 8 : i32
    %c0_i32 = arith.constant 0 : i32
    %41 = arith.cmpi eq, %c8_i32, %c0_i32 : i32
    %c1_i32 = arith.constant 1 : i32
    %42 = arith.select %41, %c1_i32, %c8_i32 : i32
    %43 = vector.broadcast %42 : i32 to vector<1x64x1xi32>
    %44 = arith.remsi %40, %43 : vector<1x64x1xi32>
    %c0_i32_24 = arith.constant 0 : i32
    %45 = vector.broadcast %c0_i32_24 : i32 to vector<1x64x1xi32>
    %46 = arith.cmpi ne, %44, %45 : vector<1x64x1xi32>
    %c0_i32_25 = arith.constant 0 : i32
    %47 = vector.broadcast %c0_i32_25 : i32 to vector<1x64x1xi32>
    %48 = arith.cmpi slt, %44, %47 : vector<1x64x1xi32>
    %c0_i32_26 = arith.constant 0 : i32
    %49 = arith.cmpi slt, %42, %c0_i32_26 : i32
    %50 = vector.broadcast %49 : i1 to vector<1x64x1xi1>
    %51 = vector.broadcast %50 : vector<1x64x1xi1> to vector<1x64x1xi1>
    %52 = arith.xori %48, %51 : vector<1x64x1xi1>
    %53 = arith.andi %52, %46 : vector<1x64x1xi1>
    %54 = vector.broadcast %42 : i32 to vector<1x64x1xi32>
    %55 = arith.addi %44, %54 : vector<1x64x1xi32>
    %56 = arith.select %53, %55, %44 : vector<1x64x1xi1>, vector<1x64x1xi32>
    %c7_i32 = arith.constant 7 : i32
    %57 = vector.broadcast %c7_i32 : i32 to vector<1x64x1xi32>
    %58 = arith.cmpi ne, %56, %57 : vector<1x64x1xi32>
    %cst_27 = arith.constant 0.000000e+00 : f32
    %59 = vector.shape_cast %58 : vector<1x64x1xi1> to vector<1x64x1xi1>
    %60 = vector.broadcast %59 : vector<1x64x1xi1> to vector<2x64x128xi1>
    %61 = vector.broadcast %cst_27 : f32 to vector<2x64x128xf32>
    %62 = arith.select %60, %35, %61 : vector<2x64x128xi1>, vector<2x64x128xf32>
    %c0_28 = arith.constant 0 : index
    %c9 = arith.constant 9 : index
    %c0_29 = arith.constant 0 : index
    %63 = vector.load %arg6[%c0_28, %c9, %c0_29] : memref<2x80x384xf32, #tpu.memory_space<vmem>>, vector<2x64x128xf32>
    tpu.vector_store %arg6[%c0_28, %c9, %c0_29], %62 {strides = array<i32>} : memref<2x80x384xf32, #tpu.memory_space<vmem>>, vector<2x64x128xf32>,
    %c0_30 = arith.constant 0 : index
    %c8 = arith.constant 8 : index
    %c128 = arith.constant 128 : index
    %64 = vector.load %arg6[%c0_30, %c8, %c128] : memref<2x80x384xf32, #tpu.memory_space<vmem>>, vector<2x64x128xf32>
    tpu.vector_store %arg6[%c0_30, %c8, %c128], %35 {strides = array<i32>} : memref<2x80x384xf32, #tpu.memory_space<vmem>>, vector<2x64x128xf32>,
    %c0_i32_31 = arith.constant 0 : i32
    %65 = vector.broadcast %c0_i32_31 : i32 to vector<1x64x1xi32>
    %66 = arith.cmpi ne, %56, %65 : vector<1x64x1xi32>
    %cst_32 = arith.constant 0.000000e+00 : f32
    %67 = vector.shape_cast %66 : vector<1x64x1xi1> to vector<1x64x1xi1>
    %68 = vector.broadcast %67 : vector<1x64x1xi1> to vector<2x64x128xi1>
    %69 = vector.broadcast %cst_32 : f32 to vector<2x64x128xf32>
    %70 = arith.select %68, %35, %69 : vector<2x64x128xi1>, vector<2x64x128xf32>
    %c0_33 = arith.constant 0 : index
    %c7 = arith.constant 7 : index
    %c256 = arith.constant 256 : index
    %71 = vector.load %arg6[%c0_33, %c7, %c256] : memref<2x80x384xf32, #tpu.memory_space<vmem>>, vector<2x64x128xf32>
    tpu.vector_store %arg6[%c0_33, %c7, %c256], %70 {strides = array<i32>} : memref<2x80x384xf32, #tpu.memory_space<vmem>>, vector<2x64x128xf32>,
    %c0_34 = arith.constant 0 : index
    %c0_35 = arith.constant 0 : index
    %c0_36 = arith.constant 0 : index
    %72 = vector.load %arg6[%c0_34, %c0_35, %c0_36] : memref<2x80x384xf32, #tpu.memory_space<vmem>>, vector<2x64x384xf32>
    %73 = vector.shape_cast %72 : vector<2x64x384xf32> to vector<128x384xf32>
    %74 = arith.truncf %73 : vector<128x384xf32> to vector<128x384xbf16>
    %c0_37 = arith.constant 0 : index
    %c0_38 = arith.constant 0 : index
    %c0_39 = arith.constant 0 : index
    %75 = vector.load %arg2[%c0_37, %c0_38, %c0_39] : memref<3x384x128xbf16, #tpu.memory_space<vmem>>, vector<1x384x128xbf16>
    %76 = vector.shape_cast %75 : vector<1x384x128xbf16> to vector<384x128xbf16>
    %cst_40 = arith.constant dense<0.000000e+00> : vector<128x128xf32>
    %77 = tpu.matmul %74, %76, %cst_40 {dimension_numbers = #tpu.dot_dimension_numbers<[1], [0], [0], [1], [0, 0, 1, 1], [], []>} : vector<128x384xbf16>, vector<384x128xbf16>, vector<128x128xf32> -> vector<128x128xf32>
    %c0_41 = arith.constant 0 : index
    %c8_42 = arith.constant 8 : index
    %c0_43 = arith.constant 0 : index
    %78 = vector.load %arg6[%c0_41, %c8_42, %c0_43] : memref<2x80x384xf32, #tpu.memory_space<vmem>>, vector<2x64x384xf32>
    %79 = vector.shape_cast %78 : vector<2x64x384xf32> to vector<128x384xf32>
    %80 = arith.truncf %79 : vector<128x384xf32> to vector<128x384xbf16>
    %c1_44 = arith.constant 1 : index
    %c0_45 = arith.constant 0 : index
    %c0_46 = arith.constant 0 : index
    %81 = vector.load %arg2[%c1_44, %c0_45, %c0_46] : memref<3x384x128xbf16, #tpu.memory_space<vmem>>, vector<1x384x128xbf16>
    %82 = vector.shape_cast %81 : vector<1x384x128xbf16> to vector<384x128xbf16>
    %cst_47 = arith.constant dense<0.000000e+00> : vector<128x128xf32>
    %83 = tpu.matmul %80, %82, %cst_47 {dimension_numbers = #tpu.dot_dimension_numbers<[1], [0], [0], [1], [0, 0, 1, 1], [], []>} : vector<128x384xbf16>, vector<384x128xbf16>, vector<128x128xf32> -> vector<128x128xf32>
    %84 = arith.addf %77, %83 : vector<128x128xf32>
    %c0_48 = arith.constant 0 : index
    %c16 = arith.constant 16 : index
    %c0_49 = arith.constant 0 : index
    %85 = vector.load %arg6[%c0_48, %c16, %c0_49] : memref<2x80x384xf32, #tpu.memory_space<vmem>>, vector<2x64x384xf32>
    %86 = vector.shape_cast %85 : vector<2x64x384xf32> to vector<128x384xf32>
    %87 = arith.truncf %86 : vector<128x384xf32> to vector<128x384xbf16>
    %c2_50 = arith.constant 2 : index
    %c0_51 = arith.constant 0 : index
    %c0_52 = arith.constant 0 : index
    %88 = vector.load %arg2[%c2_50, %c0_51, %c0_52] : memref<3x384x128xbf16, #tpu.memory_space<vmem>>, vector<1x384x128xbf16>
    %89 = vector.shape_cast %88 : vector<1x384x128xbf16> to vector<384x128xbf16>
    %cst_53 = arith.constant dense<0.000000e+00> : vector<128x128xf32>
    %90 = tpu.matmul %87, %89, %cst_53 {dimension_numbers = #tpu.dot_dimension_numbers<[1], [0], [0], [1], [0, 0, 1, 1], [], []>} : vector<128x384xbf16>, vector<384x128xbf16>, vector<128x128xf32> -> vector<128x128xf32>
    %91 = arith.addf %84, %90 : vector<128x128xf32>
    %cst_54 = arith.constant dense<0.000000e+00> : vector<128xf32>
    %92 = vector.multi_reduction <add>, %91, %cst_54 [0] : vector<128x128xf32> to vector<128xf32>
    %93 = vector.shape_cast %92 : vector<128xf32> to vector<1x128xf32>
    %cst_55 = arith.constant 7.812500e-03 : f32
    %94 = vector.broadcast %cst_55 : f32 to vector<1x128xf32>
    %95 = arith.mulf %93, %94 : vector<1x128xf32>
    %96 = arith.mulf %91, %91 : vector<128x128xf32>
    %cst_56 = arith.constant dense<0.000000e+00> : vector<128xf32>
    %97 = vector.multi_reduction <add>, %96, %cst_56 [0] : vector<128x128xf32> to vector<128xf32>
    %98 = vector.shape_cast %97 : vector<128xf32> to vector<1x128xf32>
    %cst_57 = arith.constant 7.812500e-03 : f32
    %99 = vector.broadcast %cst_57 : f32 to vector<1x128xf32>
    %100 = arith.mulf %98, %99 : vector<1x128xf32>
    %101 = arith.mulf %95, %95 : vector<1x128xf32>
    %102 = arith.subf %100, %101 : vector<1x128xf32>
    %cst_58 = arith.constant 0.000000e+00 : f32
    %103 = vector.broadcast %cst_58 : f32 to vector<1x128xf32>
    %104 = arith.maximumf %102, %103 : vector<1x128xf32>
    %105 = vector.broadcast %95 : vector<1x128xf32> to vector<128x128xf32>
    %106 = arith.subf %91, %105 : vector<128x128xf32>
    %cst_59 = arith.constant 9.99999974E-6 : f32
    %107 = vector.broadcast %cst_59 : f32 to vector<1x128xf32>
    %108 = arith.addf %104, %107 : vector<1x128xf32>
    %109 = math.rsqrt %108 : vector<1x128xf32>
    %110 = vector.broadcast %109 : vector<1x128xf32> to vector<128x128xf32>
    %111 = arith.mulf %106, %110 : vector<128x128xf32>
    %112 = vector.broadcast %2 : vector<1x128xf32> to vector<128x128xf32>
    %113 = arith.mulf %111, %112 : vector<128x128xf32>
    %114 = vector.broadcast %3 : vector<1x128xf32> to vector<128x128xf32>
    %115 = arith.addf %113, %114 : vector<128x128xf32>
    %c0_60 = arith.constant 0 : index
    %c0_61 = arith.constant 0 : index
    %116 = vector.load %arg0[%c0_60, %c0_61] : memref<128x128xbf16, #tpu.memory_space<vmem>>, vector<128x128xbf16>
    %c0_62 = arith.constant 0 : index
    %c0_63 = arith.constant 0 : index
    %117 = vector.load %arg3[%c0_62, %c0_63] : memref<128x128xbf16, #tpu.memory_space<vmem>>, vector<128x128xbf16>
    %cst_64 = arith.constant dense<0.000000e+00> : vector<128x128xf32>
    %118 = tpu.matmul %116, %117, %cst_64 {dimension_numbers = #tpu.dot_dimension_numbers<[1], [0], [0], [1], [0, 0, 1, 1], [], []>} : vector<128x128xbf16>, vector<128x128xbf16>, vector<128x128xf32> -> vector<128x128xf32>
    %cst_65 = arith.constant dense<0.000000e+00> : vector<128xf32>
    %119 = vector.multi_reduction <add>, %118, %cst_65 [0] : vector<128x128xf32> to vector<128xf32>
    %120 = vector.shape_cast %119 : vector<128xf32> to vector<1x128xf32>
    %cst_66 = arith.constant 7.812500e-03 : f32
    %121 = vector.broadcast %cst_66 : f32 to vector<1x128xf32>
    %122 = arith.mulf %120, %121 : vector<1x128xf32>
    %123 = arith.mulf %118, %118 : vector<128x128xf32>
    %cst_67 = arith.constant dense<0.000000e+00> : vector<128xf32>
    %124 = vector.multi_reduction <add>, %123, %cst_67 [0] : vector<128x128xf32> to vector<128xf32>
    %125 = vector.shape_cast %124 : vector<128xf32> to vector<1x128xf32>
    %cst_68 = arith.constant 7.812500e-03 : f32
    %126 = vector.broadcast %cst_68 : f32 to vector<1x128xf32>
    %127 = arith.mulf %125, %126 : vector<1x128xf32>
    %128 = arith.mulf %122, %122 : vector<1x128xf32>
    %129 = arith.subf %127, %128 : vector<1x128xf32>
    %cst_69 = arith.constant 0.000000e+00 : f32
    %130 = vector.broadcast %cst_69 : f32 to vector<1x128xf32>
    %131 = arith.maximumf %129, %130 : vector<1x128xf32>
    %132 = vector.broadcast %122 : vector<1x128xf32> to vector<128x128xf32>
    %133 = arith.subf %118, %132 : vector<128x128xf32>
    %cst_70 = arith.constant 9.99999974E-6 : f32
    %134 = vector.broadcast %cst_70 : f32 to vector<1x128xf32>
    %135 = arith.addf %131, %134 : vector<1x128xf32>
    %136 = math.rsqrt %135 : vector<1x128xf32>
    %137 = vector.broadcast %136 : vector<1x128xf32> to vector<128x128xf32>
    %138 = arith.mulf %133, %137 : vector<128x128xf32>
    %139 = vector.broadcast %4 : vector<1x128xf32> to vector<128x128xf32>
    %140 = arith.mulf %138, %139 : vector<128x128xf32>
    %141 = vector.broadcast %5 : vector<1x128xf32> to vector<128x128xf32>
    %142 = arith.addf %140, %141 : vector<128x128xf32>
    %143 = arith.addf %115, %142 : vector<128x128xf32>
    %cst_71 = arith.constant 0.000000e+00 : f32
    %144 = vector.broadcast %cst_71 : f32 to vector<128x128xf32>
    %145 = arith.maximumf %143, %144 : vector<128x128xf32>
    %c0_72 = arith.constant 0 : index
    %c0_73 = arith.constant 0 : index
    %146 = vector.load %arg5[%c0_72, %c0_73] : memref<128x128xf32, #tpu.memory_space<vmem>>, vector<128x128xf32>
    tpu.vector_store %arg5[%c0_72, %c0_73], %145 {strides = array<i32>} : memref<128x128xf32, #tpu.memory_space<vmem>>, vector<128x128xf32>,
    return
  }
}

</mosaic_0001>

<llo_original>
// kernel: standard_block_forward.1
$region0: #{standard_block_forward.1}
  #allocation0 [shape = 'u32[]', space=smem, size = 0x4, offset = 0x4, fixed_abs, tag = 'smem constant byte address 0x4 - core index']
  #allocation1 [shape = 'u32[144,128]{1,0:T(1,128)}', space=vmem, size = 0x12000, scoped, tag = 'internal scratch']
  #allocation2 [shape = 'f32[2,80,384]{2,1,0:T(8,128)}', space=vmem, size = 0x3c000, scoped, tag = 'scratch operand']
  %s0 = inlined_call_operand.vmem [shape: bf16[128,128], index: 0, kind: input, shape index: {}]
  %s1 = inlined_call_operand.vmem [shape: bf16[128,128], index: 1, kind: input, shape index: {}]
  %s2 = inlined_call_operand.vmem [shape: bf16[3,384,128], index: 2, kind: input, shape index: {}]
  %s3 = inlined_call_operand.vmem [shape: bf16[128,128], index: 3, kind: input, shape index: {}]
  %s4 = inlined_call_operand.vmem [shape: f32[8,128], index: 4, kind: input, shape index: {}]
  %s5 = inlined_call_operand.vmem [shape: f32[128,128], index: 5, kind: output, shape index: {}]
  %s6 = sld [smem:[#allocation0]]
  $region30: #{standard_block_forward.1} parent=0
    _
  %s8 = ssub.s32 1, %s6
  %s9 = scalar_select 0, %s8, %s6
  // Predicated region
  $region2: #{standard_block_forward.1} parent=0 // pred_check
    _
  $region3: #{standard_block_forward.1} parent=0 // pred_check_branch
    %11 = sbr.rel (0) target = $region5
  $region4: #{standard_block_forward.1} parent=0 // pred_region
    _
  $region5: #{standard_block_forward.1} parent=0 // pred_fallthru
    _
  // Predicated region
  $region6: #{standard_block_forward.1} parent=0 // pred_check
    _
  $region7: #{standard_block_forward.1} parent=0 // pred_check_branch
    %13 = sbr.rel (0) target = $region9
  $region8: #{standard_block_forward.1} parent=0 // pred_region
    _
  $region9: #{standard_block_forward.1} parent=0 // pred_fallthru
    _
  // Predicated region
  $region10: #{standard_block_forward.1} parent=0 // pred_check
    _
  $region11: #{standard_block_forward.1} parent=0 // pred_check_branch
    %15 = sbr.rel (0) target = $region13
  $region12: #{standard_block_forward.1} parent=0 // pred_region
    _
  $region13: #{standard_block_forward.1} parent=0 // pred_fallthru
    _
  // Predicated region
  $region14: #{standard_block_forward.1} parent=0 // pred_check
    _
  $region15: #{standard_block_forward.1} parent=0 // pred_check_branch
    %17 = sbr.rel (0) target = $region17
  $region16: #{standard_block_forward.1} parent=0 // pred_region
    _
  $region17: #{standard_block_forward.1} parent=0 // pred_fallthru
    _
  // Predicated region
  $region18: #{standard_block_forward.1} parent=0 // pred_check
    _
  $region19: #{standard_block_forward.1} parent=0 // pred_check_branch
    %19 = sbr.rel (0) target = $region21
  $region20: #{standard_block_forward.1} parent=0 // pred_region
    _
  $region21: #{standard_block_forward.1} parent=0 // pred_fallthru
    _
  %v21 = vld [vmem:[%s4] sm:$0x1]
  %v22 = vld [vmem:[%s4 + $0x1] sm:$0x1]
  %v23 = vld [vmem:[%s4 + $0x2] sm:$0x1]
  %v24 = vld [vmem:[%s4 + $0x3] sm:$0x1]
  %v25 = vld [vmem:[%s4 + $0x4] sm:$0x1]
  %v26 = vld [vmem:[%s4 + $0x5] sm:$0x1]
  %v27 = vld [vmem:[%s0] sm:$0xf]
  %v28 = vld [vmem:[%s0 + $0x4] sm:$0xf]
  %v29 = vld [vmem:[%s0 + $0x8] sm:$0xf]
  %v30 = vld [vmem:[%s0 + $0xc] sm:$0xf]
  %v31 = vld [vmem:[%s0 + $0x10] sm:$0xf]
  %v32 = vld [vmem:[%s0 + $0x14] sm:$0xf]
  %v33 = vld [vmem:[%s0 + $0x18] sm:$0xf]
  %v34 = vld [vmem:[%s0 + $0x1c] sm:$0xf]
  %v35 = vld [vmem:[%s0 + $0x20] sm:$0xf]
  %v36 = vld [vmem:[%s0 + $0x24] sm:$0xf]
  %v37 = vld [vmem:[%s0 + $0x28] sm:$0xf]
  %v38 = vld [vmem:[%s0 + $0x2c] sm:$0xf]
  %v39 = vld [vmem:[%s0 + $0x30] sm:$0xf]
  %v40 = vld [vmem:[%s0 + $0x34] sm:$0xf]
  %v41 = vld [vmem:[%s0 + $0x38] sm:$0xf]
  %v42 = vld [vmem:[%s0 + $0x3c] sm:$0xf]
  %v43 = vld [vmem:[%s1] sm:$0xf]
  %v44 = vld [vmem:[%s1 + $0x4] sm:$0xf]
  %v45 = vld [vmem:[%s1 + $0x8] sm:$0xf]
  %v46 = vld [vmem:[%s1 + $0xc] sm:$0xf]
  %v47 = vld [vmem:[%s1 + $0x10] sm:$0xf]
  %v48 = vld [vmem:[%s1 + $0x14] sm:$0xf]
  %v49 = vld [vmem:[%s1 + $0x18] sm:$0xf]
  %v50 = vld [vmem:[%s1 + $0x1c] sm:$0xf]
  %v51 = vld [vmem:[%s1 + $0x20] sm:$0xf]
  %v52 = vld [vmem:[%s1 + $0x24] sm:$0xf]
  %v53 = vld [vmem:[%s1 + $0x28] sm:$0xf]
  %v54 = vld [vmem:[%s1 + $0x2c] sm:$0xf]
  %v55 = vld [vmem:[%s1 + $0x30] sm:$0xf]
  %v56 = vld [vmem:[%s1 + $0x34] sm:$0xf]
  %v57 = vld [vmem:[%s1 + $0x38] sm:$0xf]
  %v58 = vld [vmem:[%s1 + $0x3c] sm:$0xf]
  %v75 = vunpack.c.l.b16 %v27
  %v76 = vunpack.c.l.b16 %v28
  %v77 = vunpack.c.l.b16 %v29
  %v78 = vunpack.c.l.b16 %v30
  %v79 = vunpack.c.l.b16 %v31
  %v80 = vunpack.c.l.b16 %v32
  %v81 = vunpack.c.l.b16 %v33
  %v82 = vunpack.c.l.b16 %v34
  %v83 = vunpack.c.l.b16 %v35
  %v84 = vunpack.c.l.b16 %v36
  %v85 = vunpack.c.l.b16 %v37
  %v86 = vunpack.c.l.b16 %v38
  %v87 = vunpack.c.l.b16 %v39
  %v88 = vunpack.c.l.b16 %v40
  %v89 = vunpack.c.l.b16 %v41
  %v90 = vunpack.c.l.b16 %v42
  %v91 = vpack.c.b16 %v76, %v75
  %v92 = vpack.c.b16 %v78, %v77
  %v93 = vpack.c.b16 %v80, %v79
  %v94 = vpack.c.b16 %v82, %v81
  %v95 = vpack.c.b16 %v84, %v83
  %v96 = vpack.c.b16 %v86, %v85
  %v97 = vpack.c.b16 %v88, %v87
  %v98 = vpack.c.b16 %v90, %v89
  %v123 = vunpack.c.l.b16 %v43
  %v124 = vunpack.c.l.b16 %v44
  %v125 = vunpack.c.l.b16 %v45
  %v126 = vunpack.c.l.b16 %v46
  %v127 = vunpack.c.l.b16 %v47
  %v128 = vunpack.c.l.b16 %v48
  %v129 = vunpack.c.l.b16 %v49
  %v130 = vunpack.c.l.b16 %v50
  %v131 = vunpack.c.l.b16 %v51
  %v132 = vunpack.c.l.b16 %v52
  %v133 = vunpack.c.l.b16 %v53
  %v134 = vunpack.c.l.b16 %v54
  %v135 = vunpack.c.l.b16 %v55
  %v136 = vunpack.c.l.b16 %v56
  %v137 = vunpack.c.l.b16 %v57
  %v138 = vunpack.c.l.b16 %v58
  %v139 = vpack.c.b16 %v124, %v123
  %v140 = vpack.c.b16 %v126, %v125
  %v141 = vpack.c.b16 %v128, %v127
  %v142 = vpack.c.b16 %v130, %v129
  %v143 = vpack.c.b16 %v132, %v131
  %v144 = vpack.c.b16 %v134, %v133
  %v145 = vpack.c.b16 %v136, %v135
  %v146 = vpack.c.b16 %v138, %v137
  %155 = vmatprep.subr.bf16.mxu0 0
  %156 = vmatpush1.bf16.msra.mxu0 %v139
  %157 = vmatprep.subr.bf16.mxu0 0
  %158 = vmatpush1.bf16.msra.mxu0 %v140
  %159 = vmatprep.subr.bf16.mxu0 0
  %160 = vmatpush1.bf16.msra.mxu0 %v141
  %161 = vmatprep.subr.bf16.mxu0 0
  %162 = vmatpush1.bf16.msra.mxu0 %v142
  %163 = vmatprep.subr.bf16.mxu0 0
  %164 = vmatpush1.bf16.msra.mxu0 %v143
  %165 = vmatprep.subr.bf16.mxu0 0
  %166 = vmatpush1.bf16.msra.mxu0 %v144
  %167 = vmatprep.subr.bf16.mxu0 0
  %168 = vmatpush1.bf16.msra.mxu0 %v145
  %169 = vmatprep.subr.bf16.mxu0 0
  %170 = vmatpush1.bf16.msra.mxu0 %v146
  %171 = vmatprep.subr.bf16.mxu0 0
  %172 = vmatpush1.bf16.msra.mxu0 0
  %173 = vmatprep.subr.bf16.mxu0 0
  %174 = vmatpush1.bf16.msra.mxu0 0
  %175 = vmatprep.subr.bf16.mxu0 0
  %176 = vmatpush1.bf16.msra.mxu0 0
  %177 = vmatprep.subr.bf16.mxu0 0
  %178 = vmatpush1.bf16.msra.mxu0 0
  %179 = vmatprep.subr.bf16.mxu0 0
  %180 = vmatpush1.bf16.msra.mxu0 0
  %181 = vmatprep.subr.bf16.mxu0 0
  %182 = vmatpush1.bf16.msra.mxu0 0
  %183 = vmatprep.subr.bf16.mxu0 0
  %184 = vmatpush1.bf16.msra.mxu0 0
  %185 = vmatprep.subr.bf16.mxu0 0
  %186 = vmatpush1.bf16.msra.mxu0 0
  %187 = vmatprep.mubr.bf16.mxu0 0
  %188 = vmatmul.mubr.bf16.gmra.mrb[0].mxu0 %v91
  %v189 = vpop.f32.mrb[0].mxu0
  %v190 = vadd.f32 0.0, %v189
  %v191 = vpop.f32.mrb[0].mxu0
  %v192 = vpop.f32.mrb[0].mxu0
  %v193 = vadd.f32 0.0, %v192
  %v194 = vpop.f32.mrb[0].mxu0
  %195 = vmatprep.mubr.bf16.mxu0 0
  %196 = vmatmul.mubr.bf16.gmra.mrb[0].mxu0 %v92
  %v197 = vpop.f32.mrb[0].mxu0
  %v198 = vadd.f32 0.0, %v197
  %v199 = vpop.f32.mrb[0].mxu0
  %v200 = vpop.f32.mrb[0].mxu0
  %v201 = vadd.f32 0.0, %v200
  %v202 = vpop.f32.mrb[0].mxu0
  %203 = vmatprep.mubr.bf16.mxu0 0
  %204 = vmatmul.mubr.bf16.gmra.mrb[0].mxu0 %v93
  %v205 = vpop.f32.mrb[0].mxu0
  %v206 = vadd.f32 0.0, %v205
  %v207 = vpop.f32.mrb[0].mxu0
  %v208 = vpop.f32.mrb[0].mxu0
  %v209 = vadd.f32 0.0, %v208
  %v210 = vpop.f32.mrb[0].mxu0
  %211 = vmatprep.mubr.bf16.mxu0 0
  %212 = vmatmul.mubr.bf16.gmra.mrb[0].mxu0 %v94
  %v213 = vpop.f32.mrb[0].mxu0
  %v214 = vadd.f32 0.0, %v213
  %v215 = vpop.f32.mrb[0].mxu0
  %v216 = vpop.f32.mrb[0].mxu0
  %v217 = vadd.f32 0.0, %v216
  %v218 = vpop.f32.mrb[0].mxu0
  %219 = vmatprep.mubr.bf16.mxu0 0
  %220 = vmatmul.mubr.bf16.gmra.mrb[0].mxu0 %v95
  %v221 = vpop.f32.mrb[0].mxu0
  %v222 = vadd.f32 0.0, %v221
  %v223 = vpop.f32.mrb[0].mxu0
  %v224 = vpop.f32.mrb[0].mxu0
  %v225 = vadd.f32 0.0, %v224
  %v226 = vpop.f32.mrb[0].mxu0
  %227 = vmatprep.mubr.bf16.mxu0 0
  %228 = vmatmul.mubr.bf16.gmra.mrb[0].mxu0 %v96
  %v229 = vpop.f32.mrb[0].mxu0
  %v230 = vadd.f32 0.0, %v229
  %v231 = vpop.f32.mrb[0].mxu0
  %v232 = vpop.f32.mrb[0].mxu0
  %v233 = vadd.f32 0.0, %v232
  %v234 = vpop.f32.mrb[0].mxu0
  %235 = vmatprep.mubr.bf16.mxu0 0
  %236 = vmatmul.mubr.bf16.gmra.mrb[0].mxu0 %v97
  %v237 = vpop.f32.mrb[0].mxu0
  %v238 = vadd.f32 0.0, %v237
  %v239 = vpop.f32.mrb[0].mxu0
  %v240 = vpop.f32.mrb[0].mxu0
  %v241 = vadd.f32 0.0, %v240
  %v242 = vpop.f32.mrb[0].mxu0
  %243 = vmatprep.mubr.bf16.mxu0 0
  %244 = vmatmul.mubr.bf16.gmra.mrb[0].mxu0 %v98
  %v245 = vpop.f32.mrb[0].mxu0
  %v246 = vadd.f32 0.0, %v245
  %v247 = vpop.f32.mrb[0].mxu0
  %v248 = vpop.f32.mrb[0].mxu0
  %v249 = vadd.f32 0.0, %v248
  %v250 = vpop.f32.mrb[0].mxu0
  %251 = vdwg.mxu0
  %v252 = vadd.f32 %v190, %v193
  %v253 = vadd.f32 %v252, %v198
  %v254 = vadd.f32 %v253, %v201
  %v255 = vadd.f32 %v254, %v206
  %v256 = vadd.f32 %v255, %v209
  %v257 = vadd.f32 %v256, %v214
  %v258 = vadd.f32 %v257, %v217
  %v259 = vadd.f32 %v258, %v222
  %v260 = vadd.f32 %v259, %v225
  %v261 = vadd.f32 %v260, %v230
  %v262 = vadd.f32 %v261, %v233
  %v263 = vadd.f32 %v262, %v238
  %v264 = vadd.f32 %v263, %v241
  %v265 = vadd.f32 %v264, %v246
  %v266 = vadd.f32 %v265, %v249
  %v267 = vrot.slane %v266, 4
  %v268 = vadd.f32 %v266, %v267
  %v269 = vrot.slane %v268, 2
  %v270 = vadd.f32 %v268, %v269
  %v271 = vrot.slane %v270, 1
  %v272 = vadd.f32 %v270, %v271
  %v273 = vmul.f32 %v272, 0.0078125
  %v274 = vmul.f32 %v190, %v190
  %v275 = vmul.f32 %v193, %v193
  %v276 = vmul.f32 %v198, %v198
  %v277 = vmul.f32 %v201, %v201
  %v278 = vmul.f32 %v206, %v206
  %v279 = vmul.f32 %v209, %v209
  %v280 = vmul.f32 %v214, %v214
  %v281 = vmul.f32 %v217, %v217
  %v282 = vmul.f32 %v222, %v222
  %v283 = vmul.f32 %v225, %v225
  %v284 = vmul.f32 %v230, %v230
  %v285 = vmul.f32 %v233, %v233
  %v286 = vmul.f32 %v238, %v238
  %v287 = vmul.f32 %v241, %v241
  %v288 = vmul.f32 %v246, %v246
  %v289 = vmul.f32 %v249, %v249
  %v290 = vadd.f32 %v274, %v275
  %v291 = vadd.f32 %v290, %v276
  %v292 = vadd.f32 %v291, %v277
  %v293 = vadd.f32 %v292, %v278
  %v294 = vadd.f32 %v293, %v279
  %v295 = vadd.f32 %v294, %v280
  %v296 = vadd.f32 %v295, %v281
  %v297 = vadd.f32 %v296, %v282
  %v298 = vadd.f32 %v297, %v283
  %v299 = vadd.f32 %v298, %v284
  %v300 = vadd.f32 %v299, %v285
  %v301 = vadd.f32 %v300, %v286
  %v302 = vadd.f32 %v301, %v287
  %v303 = vadd.f32 %v302, %v288
  %v304 = vadd.f32 %v303, %v289
  %v305 = vrot.slane %v304, 4
  %v306 = vadd.f32 %v304, %v305
  %v307 = vrot.slane %v306, 2
  %v308 = vadd.f32 %v306, %v307
  %v309 = vrot.slane %v308, 1
  %v310 = vadd.f32 %v308, %v309
  %v311 = vmul.f32 %v310, 0.0078125
  %v312 = vmul.f32 %v273, %v273
  %v313 = vsub.f32 %v311, %v312
  %v314 = vmax.f32 %v313, 0.0
  %v315 = vsub.f32 %v190, %v273
  %v316 = vsub.f32 %v193, %v273
  %v317 = vsub.f32 %v198, %v273
  %v318 = vsub.f32 %v201, %v273
  %v319 = vsub.f32 %v206, %v273
  %v320 = vsub.f32 %v209, %v273
  %v321 = vsub.f32 %v214, %v273
  %v322 = vsub.f32 %v217, %v273
  %v323 = vsub.f32 %v222, %v273
  %v324 = vsub.f32 %v225, %v273
  %v325 = vsub.f32 %v230, %v273
  %v326 = vsub.f32 %v233, %v273
  %v327 = vsub.f32 %v238, %v273
  %v328 = vsub.f32 %v241, %v273
  %v329 = vsub.f32 %v246, %v273
  %v330 = vsub.f32 %v249, %v273
  %v331 = vadd.f32 %v314, 1e-05
  %v332 = vrsqrt.pop %v331
  %v333 = vmul.f32 %v315, %v332
  %v334 = vmul.f32 %v316, %v332
  %v335 = vmul.f32 %v317, %v332
  %v336 = vmul.f32 %v318, %v332
  %v337 = vmul.f32 %v319, %v332
  %v338 = vmul.f32 %v320, %v332
  %v339 = vmul.f32 %v321, %v332
  %v340 = vmul.f32 %v322, %v332
  %v341 = vmul.f32 %v323, %v332
  %v342 = vmul.f32 %v324, %v332
  %v343 = vmul.f32 %v325, %v332
  %v344 = vmul.f32 %v326, %v332
  %v345 = vmul.f32 %v327, %v332
  %v346 = vmul.f32 %v328, %v332
  %v347 = vmul.f32 %v329, %v332
  %v348 = vmul.f32 %v330, %v332
  %v349 = vlaneseq
  %v350 = vshrl.u32 %v349, 7
  %v351 = vsub.s32 0, %v350
  %v352 = vrot.slane %v21, %v351
  %v353 = vmul.f32 %v333, %v352
  %v354 = vmul.f32 %v334, %v352
  %v355 = vmul.f32 %v335, %v352
  %v356 = vmul.f32 %v336, %v352
  %v357 = vmul.f32 %v337, %v352
  %v358 = vmul.f32 %v338, %v352
  %v359 = vmul.f32 %v339, %v352
  %v360 = vmul.f32 %v340, %v352
  %v361 = vmul.f32 %v341, %v352
  %v362 = vmul.f32 %v342, %v352
  %v363 = vmul.f32 %v343, %v352
  %v364 = vmul.f32 %v344, %v352
  %v365 = vmul.f32 %v345, %v352
  %v366 = vmul.f32 %v346, %v352
  %v367 = vmul.f32 %v347, %v352
  %v368 = vmul.f32 %v348, %v352
  %v369 = vlaneseq
  %v370 = vshrl.u32 %v369, 7
  %v371 = vsub.s32 0, %v370
  %v372 = vrot.slane %v22, %v371
  %v373 = vadd.f32 %v353, %v372
  %v374 = vadd.f32 %v354, %v372
  %v375 = vadd.f32 %v355, %v372
  %v376 = vadd.f32 %v356, %v372
  %v377 = vadd.f32 %v357, %v372
  %v378 = vadd.f32 %v358, %v372
  %v379 = vadd.f32 %v359, %v372
  %v380 = vadd.f32 %v360, %v372
  %v381 = vadd.f32 %v361, %v372
  %v382 = vadd.f32 %v362, %v372
  %v383 = vadd.f32 %v363, %v372
  %v384 = vadd.f32 %v364, %v372
  %v385 = vadd.f32 %v365, %v372
  %v386 = vadd.f32 %v366, %v372
  %v387 = vadd.f32 %v367, %v372
  %v388 = vadd.f32 %v368, %v372
  %v389 = vmax.f32 %v373, 0.0
  %v390 = vmax.f32 %v374, 0.0
  %v391 = vmax.f32 %v375, 0.0
  %v392 = vmax.f32 %v376, 0.0
  %v393 = vmax.f32 %v377, 0.0
  %v394 = vmax.f32 %v378, 0.0
  %v395 = vmax.f32 %v379, 0.0
  %v396 = vmax.f32 %v380, 0.0
  %v397 = vmax.f32 %v381, 0.0
  %v398 = vmax.f32 %v382, 0.0
  %v399 = vmax.f32 %v383, 0.0
  %v400 = vmax.f32 %v384, 0.0
  %v401 = vmax.f32 %v385, 0.0
  %v402 = vmax.f32 %v386, 0.0
  %v403 = vmax.f32 %v387, 0.0
  %v404 = vmax.f32 %v388, 0.0
  %405 = vst [vmem:[#allocation2] sm:$0xff] 0.0
  %406 = vst [vmem:[#allocation2 + $0x8] sm:$0xff] 0.0
  %407 = vst [vmem:[#allocation2 + $0x10] sm:$0xff] 0.0
  %408 = vst [vmem:[#allocation2 + $0x18] sm:$0x1] 0.0
  %409 = vst [vmem:[#allocation2 + $0x20] sm:$0x1] 0.0
  %410 = vst [vmem:[#allocation2 + $0x28] sm:$0x1] 0.0
  %411 = vst [vmem:[#allocation2 + $0xf0] sm:$0xff] 0.0
  %412 = vst [vmem:[#allocation2 + $0xf8] sm:$0xff] 0.0
  %413 = vst [vmem:[#allocation2 + $0x100] sm:$0xff] 0.0
  %414 = vst [vmem:[#allocation2 + $0x108] sm:$0x1] 0.0
  %415 = vst [vmem:[#allocation2 + $0x110] sm:$0x1] 0.0
  %416 = vst [vmem:[#allocation2 + $0x118] sm:$0x1] 0.0
  %417 = vst [vmem:[#allocation2 + $0xc0] sm:$0x80] 0.0
  %418 = vst [vmem:[#allocation2 + $0xc8] sm:$0x80] 0.0
  %419 = vst [vmem:[#allocation2 + $0xd0] sm:$0x80] 0.0
  %420 = vst [vmem:[#allocation2 + $0xd8] sm:$0xff] 0.0
  %421 = vst [vmem:[#allocation2 + $0xe0] sm:$0xff] 0.0
  %422 = vst [vmem:[#allocation2 + $0xe8] sm:$0xff] 0.0
  %423 = vst [vmem:[#allocation2 + $0x1b0] sm:$0x80] 0.0
  %424 = vst [vmem:[#allocation2 + $0x1b8] sm:$0x80] 0.0
  %425 = vst [vmem:[#allocation2 + $0x1c0] sm:$0x80] 0.0
  %426 = vst [vmem:[#allocation2 + $0x1c8] sm:$0xff] 0.0
  %427 = vst [vmem:[#allocation2 + $0x1d0] sm:$0xff] 0.0
  %428 = vst [vmem:[#allocation2 + $0x1d8] sm:$0xff] 0.0
  %v429 = vlaneseq
  %v430 = vshrl.u32 %v429, 7
  %v431 = vadd.s32 %v430, 8
  %v432 = vadd.s32 %v430, 16
  %v433 = vadd.s32 %v430, 24
  %v434 = vadd.s32 %v430, 32
  %v435 = vadd.s32 %v430, 40
  %v436 = vadd.s32 %v430, 48
  %v437 = vadd.s32 %v430, 56
  %vm438 = vcmp.lt.s32.totalorder %v430, 0
  %v439 = vsub.s32 0, %v430
  %v440 = vsel %vm438, %v439, %v430
  %v441 = vshrl.u32 %v440, 3
  %v442 = vand.u32 %v440, 7
  %v443 = vsub.s32 0, %v442
  %v444 = vsel %vm438, %v443, %v442
  %vm445 = vcmp.lt.s32.totalorder %v431, 0
  %v446 = vsub.s32 0, %v431
  %v447 = vsel %vm445, %v446, %v431
  %v448 = vshrl.u32 %v447, 3
  %v449 = vand.u32 %v447, 7
  %v450 = vsub.s32 0, %v449
  %v451 = vsel %vm445, %v450, %v449
  %vm452 = vcmp.lt.s32.totalorder %v432, 0
  %v453 = vsub.s32 0, %v432
  %v454 = vsel %vm452, %v453, %v432
  %v455 = vshrl.u32 %v454, 3
  %v456 = vand.u32 %v454, 7
  %v457 = vsub.s32 0, %v456
  %v458 = vsel %vm452, %v457, %v456
  %vm459 = vcmp.lt.s32.totalorder %v433, 0
  %v460 = vsub.s32 0, %v433
  %v461 = vsel %vm459, %v460, %v433
  %v462 = vshrl.u32 %v461, 3
  %v463 = vand.u32 %v461, 7
  %v464 = vsub.s32 0, %v463
  %v465 = vsel %vm459, %v464, %v463
  %vm466 = vcmp.lt.s32.totalorder %v434, 0
  %v467 = vsub.s32 0, %v434
  %v468 = vsel %vm466, %v467, %v434
  %v469 = vshrl.u32 %v468, 3
  %v470 = vand.u32 %v468, 7
  %v471 = vsub.s32 0, %v470
  %v472 = vsel %vm466, %v471, %v470
  %vm473 = vcmp.lt.s32.totalorder %v435, 0
  %v474 = vsub.s32 0, %v435
  %v475 = vsel %vm473, %v474, %v435
  %v476 = vshrl.u32 %v475, 3
  %v477 = vand.u32 %v475, 7
  %v478 = vsub.s32 0, %v477
  %v479 = vsel %vm473, %v478, %v477
  %vm480 = vcmp.lt.s32.totalorder %v436, 0
  %v481 = vsub.s32 0, %v436
  %v482 = vsel %vm480, %v481, %v436
  %v483 = vshrl.u32 %v482, 3
  %v484 = vand.u32 %v482, 7
  %v485 = vsub.s32 0, %v484
  %v486 = vsel %vm480, %v485, %v484
  %vm487 = vcmp.lt.s32.totalorder %v437, 0
  %v488 = vsub.s32 0, %v437
  %v489 = vsel %vm487, %v488, %v437
  %v490 = vshrl.u32 %v489, 3
  %v491 = vand.u32 %v489, 7
  %v492 = vsub.s32 0, %v491
  %v493 = vsel %vm487, %v492, %v491
  %vm494 = vcmp.ne.s32.totalorder %v444, 0
  %vm495 = vcmp.ne.s32.totalorder %v451, 0
  %vm496 = vcmp.ne.s32.totalorder %v458, 0
  %vm497 = vcmp.ne.s32.totalorder %v465, 0
  %vm498 = vcmp.ne.s32.totalorder %v472, 0
  %vm499 = vcmp.ne.s32.totalorder %v479, 0
  %vm500 = vcmp.ne.s32.totalorder %v486, 0
  %vm501 = vcmp.ne.s32.totalorder %v493, 0
  %vm502 = vcmp.lt.s32.totalorder %v444, 0
  %vm503 = vcmp.lt.s32.totalorder %v451, 0
  %vm504 = vcmp.lt.s32.totalorder %v458, 0
  %vm505 = vcmp.lt.s32.totalorder %v465, 0
  %vm506 = vcmp.lt.s32.totalorder %v472, 0
  %vm507 = vcmp.lt.s32.totalorder %v479, 0
  %vm508 = vcmp.lt.s32.totalorder %v486, 0
  %vm509 = vcmp.lt.s32.totalorder %v493, 0
  %vm510 = vmand %vm502, %vm494
  %vm511 = vmand %vm503, %vm495
  %vm512 = vmand %vm504, %vm496
  %vm513 = vmand %vm505, %vm497
  %vm514 = vmand %vm506, %vm498
  %vm515 = vmand %vm507, %vm499
  %vm516 = vmand %vm508, %vm500
  %vm517 = vmand %vm509, %vm501
  %v518 = vadd.s32 %v444, 8
  %v519 = vadd.s32 %v451, 8
  %v520 = vadd.s32 %v458, 8
  %v521 = vadd.s32 %v465, 8
  %v522 = vadd.s32 %v472, 8
  %v523 = vadd.s32 %v479, 8
  %v524 = vadd.s32 %v486, 8
  %v525 = vadd.s32 %v493, 8
  %v526 = vsel %vm510, %v518, %v444
  %v527 = vsel %vm511, %v519, %v451
  %v528 = vsel %vm512, %v520, %v458
  %v529 = vsel %vm513, %v521, %v465
  %v530 = vsel %vm514, %v522, %v472
  %v531 = vsel %vm515, %v523, %v479
  %v532 = vsel %vm516, %v524, %v486
  %v533 = vsel %vm517, %v525, %v493
  %vm534 = vcmp.ne.s32.totalorder %v526, 7
  %vm535 = vcmp.ne.s32.totalorder %v527, 7
  %vm536 = vcmp.ne.s32.totalorder %v528, 7
  %vm537 = vcmp.ne.s32.totalorder %v529, 7
  %vm538 = vcmp.ne.s32.totalorder %v530, 7
  %vm539 = vcmp.ne.s32.totalorder %v531, 7
  %vm540 = vcmp.ne.s32.totalorder %v532, 7
  %vm541 = vcmp.ne.s32.totalorder %v533, 7
  %v542 = vsel %vm534, 1, 0
  %v543 = vsel %vm535, 1, 0
  %v544 = vsel %vm536, 1, 0
  %v545 = vsel %vm537, 1, 0
  %v546 = vsel %vm538, 1, 0
  %v547 = vsel %vm539, 1, 0
  %v548 = vsel %vm540, 1, 0
  %v549 = vsel %vm541, 1, 0
  %vm550 = vcmp.eq.s32.totalorder %v542, 1
  %vm551 = vcmp.eq.s32.totalorder %v543, 1
  %vm552 = vcmp.eq.s32.totalorder %v544, 1
  %vm553 = vcmp.eq.s32.totalorder %v545, 1
  %vm554 = vcmp.eq.s32.totalorder %v546, 1
  %vm555 = vcmp.eq.s32.totalorder %v547, 1
  %vm556 = vcmp.eq.s32.totalorder %v548, 1
  %vm557 = vcmp.eq.s32.totalorder %v549, 1
  %v558 = vsel %vm550, %v389, 0.0
  %v559 = vsel %vm551, %v390, 0.0
  %v560 = vsel %vm552, %v391, 0.0
  %v561 = vsel %vm553, %v392, 0.0
  %v562 = vsel %vm554, %v393, 0.0
  %v563 = vsel %vm555, %v394, 0.0
  %v564 = vsel %vm556, %v395, 0.0
  %v565 = vsel %vm557, %v396, 0.0
  %v566 = vsel %vm550, %v397, 0.0
  %v567 = vsel %vm551, %v398, 0.0
  %v568 = vsel %vm552, %v399, 0.0
  %v569 = vsel %vm553, %v400, 0.0
  %v570 = vsel %vm554, %v401, 0.0
  %v571 = vsel %vm555, %v402, 0.0
  %v572 = vsel %vm556, %v403, 0.0
  %v573 = vsel %vm557, %v404, 0.0
  %vm590 = vcmask 1040384
  %v591 = vrot.slane %v558, 7
  %v592 = vrot.slane %v559, 7
  %v593 = vsel %vm590, %v591, %v592
  %v594 = vrot.slane %v560, 7
  %v595 = vsel %vm590, %v592, %v594
  %v596 = vrot.slane %v561, 7
  %v597 = vsel %vm590, %v594, %v596
  %v598 = vrot.slane %v562, 7
  %v599 = vsel %vm590, %v596, %v598
  %v600 = vrot.slane %v563, 7
  %v601 = vsel %vm590, %v598, %v600
  %v602 = vrot.slane %v564, 7
  %v603 = vsel %vm590, %v600, %v602
  %v604 = vrot.slane %v565, 7
  %v605 = vsel %vm590, %v602, %v604
  %v606 = vrot.slane %v566, 7
  %v607 = vrot.slane %v567, 7
  %v608 = vsel %vm590, %v606, %v607
  %v609 = vrot.slane %v568, 7
  %v610 = vsel %vm590, %v607, %v609
  %v611 = vrot.slane %v569, 7
  %v612 = vsel %vm590, %v609, %v611
  %v613 = vrot.slane %v570, 7
  %v614 = vsel %vm590, %v611, %v613
  %v615 = vrot.slane %v571, 7
  %v616 = vsel %vm590, %v613, %v615
  %v617 = vrot.slane %v572, 7
  %v618 = vsel %vm590, %v615, %v617
  %v619 = vrot.slane %v573, 7
  %v620 = vsel %vm590, %v617, %v619
  %639 = vst [vmem:[#allocation2 + $0x18] sm:$0xfe] %v591
  %640 = vst [vmem:[#allocation2 + $0x30] sm:$0xff] %v593
  %641 = vst [vmem:[#allocation2 + $0x48] sm:$0xff] %v595
  %642 = vst [vmem:[#allocation2 + $0x60] sm:$0xff] %v597
  %643 = vst [vmem:[#allocation2 + $0x78] sm:$0xff] %v599
  %644 = vst [vmem:[#allocation2 + $0x90] sm:$0xff] %v601
  %645 = vst [vmem:[#allocation2 + $0xa8] sm:$0xff] %v603
  %646 = vst [vmem:[#allocation2 + $0xc0] sm:$0xff] %v605
  %647 = vst [vmem:[#allocation2 + $0xd8] sm:$0x1] %v604
  %648 = vst [vmem:[#allocation2 + $0x108] sm:$0xfe] %v606
  %649 = vst [vmem:[#allocation2 + $0x120] sm:$0xff] %v608
  %650 = vst [vmem:[#allocation2 + $0x138] sm:$0xff] %v610
  %651 = vst [vmem:[#allocation2 + $0x150] sm:$0xff] %v612
  %652 = vst [vmem:[#allocation2 + $0x168] sm:$0xff] %v614
  %653 = vst [vmem:[#allocation2 + $0x180] sm:$0xff] %v616
  %654 = vst [vmem:[#allocation2 + $0x198] sm:$0xff] %v618
  %655 = vst [vmem:[#allocation2 + $0x1b0] sm:$0xff] %v620
  %656 = vst [vmem:[#allocation2 + $0x1c8] sm:$0x1] %v619
  %657 = vst [vmem:[#allocation2 + $0x20] sm:$0xff] %v389
  %658 = vst [vmem:[#allocation2 + $0x38] sm:$0xff] %v390
  %659 = vst [vmem:[#allocation2 + $0x50] sm:$0xff] %v391
  %660 = vst [vmem:[#allocation2 + $0x68] sm:$0xff] %v392
  %661 = vst [vmem:[#allocation2 + $0x80] sm:$0xff] %v393
  %662 = vst [vmem:[#allocation2 + $0x98] sm:$0xff] %v394
  %663 = vst [vmem:[#allocation2 + $0xb0] sm:$0xff] %v395
  %664 = vst [vmem:[#allocation2 + $0xc8] sm:$0xff] %v396
  %665 = vst [vmem:[#allocation2 + $0x110] sm:$0xff] %v397
  %666 = vst [vmem:[#allocation2 + $0x128] sm:$0xff] %v398
  %667 = vst [vmem:[#allocation2 + $0x140] sm:$0xff] %v399
  %668 = vst [vmem:[#allocation2 + $0x158] sm:$0xff] %v400
  %669 = vst [vmem:[#allocation2 + $0x170] sm:$0xff] %v401
  %670 = vst [vmem:[#allocation2 + $0x188] sm:$0xff] %v402
  %671 = vst [vmem:[#allocation2 + $0x1a0] sm:$0xff] %v403
  %672 = vst [vmem:[#allocation2 + $0x1b8] sm:$0xff] %v404
  %vm673 = vcmp.ne.s32.totalorder %v526, 0
  %vm674 = vcmp.ne.s32.totalorder %v527, 0
  %vm675 = vcmp.ne.s32.totalorder %v528, 0
  %vm676 = vcmp.ne.s32.totalorder %v529, 0
  %vm677 = vcmp.ne.s32.totalorder %v530, 0
  %vm678 = vcmp.ne.s32.totalorder %v531, 0
  %vm679 = vcmp.ne.s32.totalorder %v532, 0
  %vm680 = vcmp.ne.s32.totalorder %v533, 0
  %v681 = vsel %vm673, 1, 0
  %v682 = vsel %vm674, 1, 0
  %v683 = vsel %vm675, 1, 0
  %v684 = vsel %vm676, 1, 0
  %v685 = vsel %vm677, 1, 0
  %v686 = vsel %vm678, 1, 0
  %v687 = vsel %vm679, 1, 0
  %v688 = vsel %vm680, 1, 0
  %vm689 = vcmp.eq.s32.totalorder %v681, 1
  %vm690 = vcmp.eq.s32.totalorder %v682, 1
  %vm691 = vcmp.eq.s32.totalorder %v683, 1
  %vm692 = vcmp.eq.s32.totalorder %v684, 1
  %vm693 = vcmp.eq.s32.totalorder %v685, 1
  %vm694 = vcmp.eq.s32.totalorder %v686, 1
  %vm695 = vcmp.eq.s32.totalorder %v687, 1
  %vm696 = vcmp.eq.s32.totalorder %v688, 1
  %v697 = vsel %vm689, %v389, 0.0
  %v698 = vsel %vm690, %v390, 0.0
  %v699 = vsel %vm691, %v391, 0.0
  %v700 = vsel %vm692, %v392, 0.0
  %v701 = vsel %vm693, %v393, 0.0
  %v702 = vsel %vm694, %v394, 0.0
  %v703 = vsel %vm695, %v395, 0.0
  %v704 = vsel %vm696, %v396, 0.0
  %v705 = vsel %vm689, %v397, 0.0
  %v706 = vsel %vm690, %v398, 0.0
  %v707 = vsel %vm691, %v399, 0.0
  %v708 = vsel %vm692, %v400, 0.0
  %v709 = vsel %vm693, %v401, 0.0
  %v710 = vsel %vm694, %v402, 0.0
  %v711 = vsel %vm695, %v403, 0.0
  %v712 = vsel %vm696, %v404, 0.0
  %vm729 = vcmask 1046528
  %v730 = vrot.slane %v697, 1
  %v731 = vrot.slane %v698, 1
  %v732 = vsel %vm729, %v730, %v731
  %v733 = vrot.slane %v699, 1
  %v734 = vsel %vm729, %v731, %v733
  %v735 = vrot.slane %v700, 1
  %v736 = vsel %vm729, %v733, %v735
  %v737 = vrot.slane %v701, 1
  %v738 = vsel %vm729, %v735, %v737
  %v739 = vrot.slane %v702, 1
  %v740 = vsel %vm729, %v737, %v739
  %v741 = vrot.slane %v703, 1
  %v742 = vsel %vm729, %v739, %v741
  %v743 = vrot.slane %v704, 1
  %v744 = vsel %vm729, %v741, %v743
  %v745 = vrot.slane %v705, 1
  %v746 = vrot.slane %v706, 1
  %v747 = vsel %vm729, %v745, %v746
  %v748 = vrot.slane %v707, 1
  %v749 = vsel %vm729, %v746, %v748
  %v750 = vrot.slane %v708, 1
  %v751 = vsel %vm729, %v748, %v750
  %v752 = vrot.slane %v709, 1
  %v753 = vsel %vm729, %v750, %v752
  %v754 = vrot.slane %v710, 1
  %v755 = vsel %vm729, %v752, %v754
  %v756 = vrot.slane %v711, 1
  %v757 = vsel %vm729, %v754, %v756
  %v758 = vrot.slane %v712, 1
  %v759 = vsel %vm729, %v756, %v758
  %778 = vst [vmem:[#allocation2 + $0x10] sm:$0x80] %v730
  %779 = vst [vmem:[#allocation2 + $0x28] sm:$0xff] %v732
  %780 = vst [vmem:[#allocation2 + $0x40] sm:$0xff] %v734
  %781 = vst [vmem:[#allocation2 + $0x58] sm:$0xff] %v736
  %782 = vst [vmem:[#allocation2 + $0x70] sm:$0xff] %v738
  %783 = vst [vmem:[#allocation2 + $0x88] sm:$0xff] %v740
  %784 = vst [vmem:[#allocation2 + $0xa0] sm:$0xff] %v742
  %785 = vst [vmem:[#allocation2 + $0xb8] sm:$0xff] %v744
  %786 = vst [vmem:[#allocation2 + $0xd0] sm:$0x7f] %v743
  %787 = vst [vmem:[#allocation2 + $0x100] sm:$0x80] %v745
  %788 = vst [vmem:[#allocation2 + $0x118] sm:$0xff] %v747
  %789 = vst [vmem:[#allocation2 + $0x130] sm:$0xff] %v749
  %790 = vst [vmem:[#allocation2 + $0x148] sm:$0xff] %v751
  %791 = vst [vmem:[#allocation2 + $0x160] sm:$0xff] %v753
  %792 = vst [vmem:[#allocation2 + $0x178] sm:$0xff] %v755
  %793 = vst [vmem:[#allocation2 + $0x190] sm:$0xff] %v757
  %794 = vst [vmem:[#allocation2 + $0x1a8] sm:$0xff] %v759
  %795 = vst [vmem:[#allocation2 + $0x1c0] sm:$0x7f] %v758
  %v796 = vld [vmem:[#allocation2] sm:$0xff]
  %v797 = vld [vmem:[#allocation2 + $0x8] sm:$0xff]
  %v798 = vld [vmem:[#allocation2 + $0x10] sm:$0xff]
  %v799 = vld [vmem:[#allocation2 + $0x18] sm:$0xff]
  %v800 = vld [vmem:[#allocation2 + $0x20] sm:$0xff]
  %v801 = vld [vmem:[#allocation2 + $0x28] sm:$0xff]
  %v802 = vld [vmem:[#allocation2 + $0x30] sm:$0xff]
  %v803 = vld [vmem:[#allocation2 + $0x38] sm:$0xff]
  %v804 = vld [vmem:[#allocation2 + $0x40] sm:$0xff]
  %v805 = vld [vmem:[#allocation2 + $0x48] sm:$0xff]
  %v806 = vld [vmem:[#allocation2 + $0x50] sm:$0xff]
  %v807 = vld [vmem:[#allocation2 + $0x58] sm:$0xff]
  %v808 = vld [vmem:[#allocation2 + $0x60] sm:$0xff]
  %v809 = vld [vmem:[#allocation2 + $0x68] sm:$0xff]
  %v810 = vld [vmem:[#allocation2 + $0x70] sm:$0xff]
  %v811 = vld [vmem:[#allocation2 + $0x78] sm:$0xff]
  %v812 = vld [vmem:[#allocation2 + $0x80] sm:$0xff]
  %v813 = vld [vmem:[#allocation2 + $0x88] sm:$0xff]
  %v814 = vld [vmem:[#allocation2 + $0x90] sm:$0xff]
  %v815 = vld [vmem:[#allocation2 + $0x98] sm:$0xff]
  %v816 = vld [vmem:[#allocation2 + $0xa0] sm:$0xff]
  %v817 = vld [vmem:[#allocation2 + $0xa8] sm:$0xff]
  %v818 = vld [vmem:[#allocation2 + $0xb0] sm:$0xff]
  %v819 = vld [vmem:[#allocation2 + $0xb8] sm:$0xff]
  %v820 = vld [vmem:[#allocation2 + $0xf0] sm:$0xff]
  %v821 = vld [vmem:[#allocation2 + $0xf8] sm:$0xff]
  %v822 = vld [vmem:[#allocation2 + $0x100] sm:$0xff]
  %v823 = vld [vmem:[#allocation2 + $0x108] sm:$0xff]
  %v824 = vld [vmem:[#allocation2 + $0x110] sm:$0xff]
  %v825 = vld [vmem:[#allocation2 + $0x118] sm:$0xff]
  %v826 = vld [vmem:[#allocation2 + $0x120] sm:$0xff]
  %v827 = vld [vmem:[#allocation2 + $0x128] sm:$0xff]
  %v828 = vld [vmem:[#allocation2 + $0x130] sm:$0xff]
  %v829 = vld [vmem:[#allocation2 + $0x138] sm:$0xff]
  %v830 = vld [vmem:[#allocation2 + $0x140] sm:$0xff]
  %v831 = vld [vmem:[#allocation2 + $0x148] sm:$0xff]
  %v832 = vld [vmem:[#allocation2 + $0x150] sm:$0xff]
  %v833 = vld [vmem:[#allocation2 + $0x158] sm:$0xff]
  %v834 = vld [vmem:[#allocation2 + $0x160] sm:$0xff]
  %v835 = vld [vmem:[#allocation2 + $0x168] sm:$0xff]
  %v836 = vld [vmem:[#allocation2 + $0x170] sm:$0xff]
  %v837 = vld [vmem:[#allocation2 + $0x178] sm:$0xff]
  %v838 = vld [vmem:[#allocation2 + $0x180] sm:$0xff]
  %v839 = vld [vmem:[#allocation2 + $0x188] sm:$0xff]
  %v840 = vld [vmem:[#allocation2 + $0x190] sm:$0xff]
  %v841 = vld [vmem:[#allocation2 + $0x198] sm:$0xff]
  %v842 = vld [vmem:[#allocation2 + $0x1a0] sm:$0xff]
  %v843 = vld [vmem:[#allocation2 + $0x1a8] sm:$0xff]
  %v844 = vpack.c.bf16 %v799, %v796
  %v845 = vpack.c.bf16 %v800, %v797
  %v846 = vpack.c.bf16 %v801, %v798
  %v847 = vpack.c.bf16 %v805, %v802
  %v848 = vpack.c.bf16 %v806, %v803
  %v849 = vpack.c.bf16 %v807, %v804
  %v850 = vpack.c.bf16 %v811, %v808
  %v851 = vpack.c.bf16 %v812, %v809
  %v852 = vpack.c.bf16 %v813, %v810
  %v853 = vpack.c.bf16 %v817, %v814
  %v854 = vpack.c.bf16 %v818, %v815
  %v855 = vpack.c.bf16 %v819, %v816
  %v856 = vpack.c.bf16 %v823, %v820
  %v857 = vpack.c.bf16 %v824, %v821
  %v858 = vpack.c.bf16 %v825, %v822
  %v859 = vpack.c.bf16 %v829, %v826
  %v860 = vpack.c.bf16 %v830, %v827
  %v861 = vpack.c.bf16 %v831, %v828
  %v862 = vpack.c.bf16 %v835, %v832
  %v863 = vpack.c.bf16 %v836, %v833
  %v864 = vpack.c.bf16 %v837, %v834
  %v865 = vpack.c.bf16 %v841, %v838
  %v866 = vpack.c.bf16 %v842, %v839
  %v867 = vpack.c.bf16 %v843, %v840
  %v868 = vld [vmem:[%s2] sm:$0xf]
  %v869 = vld [vmem:[%s2 + $0x4] sm:$0xf]
  %v870 = vld [vmem:[%s2 + $0x8] sm:$0xf]
  %v871 = vld [vmem:[%s2 + $0xc] sm:$0xf]
  %v872 = vld [vmem:[%s2 + $0x10] sm:$0xf]
  %v873 = vld [vmem:[%s2 + $0x14] sm:$0xf]
  %v874 = vld [vmem:[%s2 + $0x18] sm:$0xf]
  %v875 = vld [vmem:[%s2 + $0x1c] sm:$0xf]
  %v876 = vld [vmem:[%s2 + $0x20] sm:$0xf]
  %v877 = vld [vmem:[%s2 + $0x24] sm:$0xf]
  %v878 = vld [vmem:[%s2 + $0x28] sm:$0xf]
  %v879 = vld [vmem:[%s2 + $0x2c] sm:$0xf]
  %v880 = vld [vmem:[%s2 + $0x30] sm:$0xf]
  %v881 = vld [vmem:[%s2 + $0x34] sm:$0xf]
  %v882 = vld [vmem:[%s2 + $0x38] sm:$0xf]
  %v883 = vld [vmem:[%s2 + $0x3c] sm:$0xf]
  %v884 = vld [vmem:[%s2 + $0x40] sm:$0xf]
  %v885 = vld [vmem:[%s2 + $0x44] sm:$0xf]
  %v886 = vld [vmem:[%s2 + $0x48] sm:$0xf]
  %v887 = vld [vmem:[%s2 + $0x4c] sm:$0xf]
  %v888 = vld [vmem:[%s2 + $0x50] sm:$0xf]
  %v889 = vld [vmem:[%s2 + $0x54] sm:$0xf]
  %v890 = vld [vmem:[%s2 + $0x58] sm:$0xf]
  %v891 = vld [vmem:[%s2 + $0x5c] sm:$0xf]
  %v892 = vld [vmem:[%s2 + $0x60] sm:$0xf]
  %v893 = vld [vmem:[%s2 + $0x64] sm:$0xf]
  %v894 = vld [vmem:[%s2 + $0x68] sm:$0xf]
  %v895 = vld [vmem:[%s2 + $0x6c] sm:$0xf]
  %v896 = vld [vmem:[%s2 + $0x70] sm:$0xf]
  %v897 = vld [vmem:[%s2 + $0x74] sm:$0xf]
  %v898 = vld [vmem:[%s2 + $0x78] sm:$0xf]
  %v899 = vld [vmem:[%s2 + $0x7c] sm:$0xf]
  %v900 = vld [vmem:[%s2 + $0x80] sm:$0xf]
  %v901 = vld [vmem:[%s2 + $0x84] sm:$0xf]
  %v902 = vld [vmem:[%s2 + $0x88] sm:$0xf]
  %v903 = vld [vmem:[%s2 + $0x8c] sm:$0xf]
  %v904 = vld [vmem:[%s2 + $0x90] sm:$0xf]
  %v905 = vld [vmem:[%s2 + $0x94] sm:$0xf]
  %v906 = vld [vmem:[%s2 + $0x98] sm:$0xf]
  %v907 = vld [vmem:[%s2 + $0x9c] sm:$0xf]
  %v908 = vld [vmem:[%s2 + $0xa0] sm:$0xf]
  %v909 = vld [vmem:[%s2 + $0xa4] sm:$0xf]
  %v910 = vld [vmem:[%s2 + $0xa8] sm:$0xf]
  %v911 = vld [vmem:[%s2 + $0xac] sm:$0xf]
  %v912 = vld [vmem:[%s2 + $0xb0] sm:$0xf]
  %v913 = vld [vmem:[%s2 + $0xb4] sm:$0xf]
  %v914 = vld [vmem:[%s2 + $0xb8] sm:$0xf]
  %v915 = vld [vmem:[%s2 + $0xbc] sm:$0xf]
  %v916 = vld [vmem:[#allocation2 + $0xc0] sm:$0xff]
  %v917 = vld [vmem:[#allocation2 + $0xc8] sm:$0xff]
  %v918 = vld [vmem:[#allocation2 + $0xd0] sm:$0xff]
  %v919 = vld [vmem:[#allocation2 + $0x1b0] sm:$0xff]
  %v920 = vld [vmem:[#allocation2 + $0x1b8] sm:$0xff]
  %v921 = vld [vmem:[#allocation2 + $0x1c0] sm:$0xff]
  %v922 = vpack.c.bf16 %v802, %v799
  %v923 = vpack.c.bf16 %v803, %v800
  %v924 = vpack.c.bf16 %v804, %v801
  %v925 = vpack.c.bf16 %v808, %v805
  %v926 = vpack.c.bf16 %v809, %v806
  %v927 = vpack.c.bf16 %v810, %v807
  %v928 = vpack.c.bf16 %v814, %v811
  %v929 = vpack.c.bf16 %v815, %v812
  %v930 = vpack.c.bf16 %v816, %v813
  %v931 = vpack.c.bf16 %v916, %v817
  %v932 = vpack.c.bf16 %v917, %v818
  %v933 = vpack.c.bf16 %v918, %v819
  %v934 = vpack.c.bf16 %v826, %v823
  %v935 = vpack.c.bf16 %v827, %v824
  %v936 = vpack.c.bf16 %v828, %v825
  %v937 = vpack.c.bf16 %v832, %v829
  %v938 = vpack.c.bf16 %v833, %v830
  %v939 = vpack.c.bf16 %v834, %v831
  %v940 = vpack.c.bf16 %v838, %v835
  %v941 = vpack.c.bf16 %v839, %v836
  %v942 = vpack.c.bf16 %v840, %v837
  %v943 = vpack.c.bf16 %v919, %v841
  %v944 = vpack.c.bf16 %v920, %v842
  %v945 = vpack.c.bf16 %v921, %v843
  %s946 = scalar_lea.vmem %s2, 192
  %v947 = vld [vmem:[%s946] sm:$0xf]
  %v948 = vld [vmem:[%s946 + $0x4] sm:$0xf]
  %v949 = vld [vmem:[%s946 + $0x8] sm:$0xf]
  %v950 = vld [vmem:[%s946 + $0xc] sm:$0xf]
  %v951 = vld [vmem:[%s946 + $0x10] sm:$0xf]
  %v952 = vld [vmem:[%s946 + $0x14] sm:$0xf]
  %v953 = vld [vmem:[%s946 + $0x18] sm:$0xf]
  %v954 = vld [vmem:[%s946 + $0x1c] sm:$0xf]
  %v955 = vld [vmem:[%s946 + $0x20] sm:$0xf]
  %v956 = vld [vmem:[%s946 + $0x24] sm:$0xf]
  %v957 = vld [vmem:[%s946 + $0x28] sm:$0xf]
  %v958 = vld [vmem:[%s946 + $0x2c] sm:$0xf]
  %v959 = vld [vmem:[%s946 + $0x30] sm:$0xf]
  %v960 = vld [vmem:[%s946 + $0x34] sm:$0xf]
  %v961 = vld [vmem:[%s946 + $0x38] sm:$0xf]
  %v962 = vld [vmem:[%s946 + $0x3c] sm:$0xf]
  %v963 = vld [vmem:[%s946 + $0x40] sm:$0xf]
  %v964 = vld [vmem:[%s946 + $0x44] sm:$0xf]
  %v965 = vld [vmem:[%s946 + $0x48] sm:$0xf]
  %v966 = vld [vmem:[%s946 + $0x4c] sm:$0xf]
  %v967 = vld [vmem:[%s946 + $0x50] sm:$0xf]
  %v968 = vld [vmem:[%s946 + $0x54] sm:$0xf]
  %v969 = vld [vmem:[%s946 + $0x58] sm:$0xf]
  %v970 = vld [vmem:[%s946 + $0x5c] sm:$0xf]
  %v971 = vld [vmem:[%s946 + $0x60] sm:$0xf]
  %v972 = vld [vmem:[%s946 + $0x64] sm:$0xf]
  %v973 = vld [vmem:[%s946 + $0x68] sm:$0xf]
  %v974 = vld [vmem:[%s946 + $0x6c] sm:$0xf]
  %v975 = vld [vmem:[%s946 + $0x70] sm:$0xf]
  %v976 = vld [vmem:[%s946 + $0x74] sm:$0xf]
  %v977 = vld [vmem:[%s946 + $0x78] sm:$0xf]
  %v978 = vld [vmem:[%s946 + $0x7c] sm:$0xf]
  %v979 = vld [vmem:[%s946 + $0x80] sm:$0xf]
  %v980 = vld [vmem:[%s946 + $0x84] sm:$0xf]
  %v981 = vld [vmem:[%s946 + $0x88] sm:$0xf]
  %v982 = vld [vmem:[%s946 + $0x8c] sm:$0xf]
  %v983 = vld [vmem:[%s946 + $0x90] sm:$0xf]
  %v984 = vld [vmem:[%s946 + $0x94] sm:$0xf]
  %v985 = vld [vmem:[%s946 + $0x98] sm:$0xf]
  %v986 = vld [vmem:[%s946 + $0x9c] sm:$0xf]
  %v987 = vld [vmem:[%s946 + $0xa0] sm:$0xf]
  %v988 = vld [vmem:[%s946 + $0xa4] sm:$0xf]
  %v989 = vld [vmem:[%s946 + $0xa8] sm:$0xf]
  %v990 = vld [vmem:[%s946 + $0xac] sm:$0xf]
  %v991 = vld [vmem:[%s946 + $0xb0] sm:$0xf]
  %v992 = vld [vmem:[%s946 + $0xb4] sm:$0xf]
  %v993 = vld [vmem:[%s946 + $0xb8] sm:$0xf]
  %v994 = vld [vmem:[%s946 + $0xbc] sm:$0xf]
  %v1043 = vunpack.c.l.b16 %v947
  %v1044 = vunpack.c.l.b16 %v948
  %v1045 = vunpack.c.l.b16 %v949
  %v1046 = vunpack.c.l.b16 %v950
  %v1047 = vunpack.c.l.b16 %v951
  %v1048 = vunpack.c.l.b16 %v952
  %v1049 = vunpack.c.l.b16 %v953
  %v1050 = vunpack.c.l.b16 %v954
  %v1051 = vunpack.c.l.b16 %v955
  %v1052 = vunpack.c.l.b16 %v956
  %v1053 = vunpack.c.l.b16 %v957
  %v1054 = vunpack.c.l.b16 %v958
  %v1055 = vunpack.c.l.b16 %v959
  %v1056 = vunpack.c.l.b16 %v960
  %v1057 = vunpack.c.l.b16 %v961
  %v1058 = vunpack.c.l.b16 %v962
  %v1059 = vunpack.c.l.b16 %v963
  %v1060 = vunpack.c.l.b16 %v964
  %v1061 = vunpack.c.l.b16 %v965
  %v1062 = vunpack.c.l.b16 %v966
  %v1063 = vunpack.c.l.b16 %v967
  %v1064 = vunpack.c.l.b16 %v968
  %v1065 = vunpack.c.l.b16 %v969
  %v1066 = vunpack.c.l.b16 %v970
  %v1067 = vunpack.c.l.b16 %v971
  %v1068 = vunpack.c.l.b16 %v972
  %v1069 = vunpack.c.l.b16 %v973
  %v1070 = vunpack.c.l.b16 %v974
  %v1071 = vunpack.c.l.b16 %v975
  %v1072 = vunpack.c.l.b16 %v976
  %v1073 = vunpack.c.l.b16 %v977
  %v1074 = vunpack.c.l.b16 %v978
  %v1075 = vunpack.c.l.b16 %v979
  %v1076 = vunpack.c.l.b16 %v980
  %v1077 = vunpack.c.l.b16 %v981
  %v1078 = vunpack.c.l.b16 %v982
  %v1079 = vunpack.c.l.b16 %v983
  %v1080 = vunpack.c.l.b16 %v984
  %v1081 = vunpack.c.l.b16 %v985
  %v1082 = vunpack.c.l.b16 %v986
  %v1083 = vunpack.c.l.b16 %v987
  %v1084 = vunpack.c.l.b16 %v988
  %v1085 = vunpack.c.l.b16 %v989
  %v1086 = vunpack.c.l.b16 %v990
  %v1087 = vunpack.c.l.b16 %v991
  %v1088 = vunpack.c.l.b16 %v992
  %v1089 = vunpack.c.l.b16 %v993
  %v1090 = vunpack.c.l.b16 %v994
  %v1091 = vpack.c.b16 %v1044, %v1043
  %v1092 = vpack.c.b16 %v1046, %v1045
  %v1093 = vpack.c.b16 %v1048, %v1047
  %v1094 = vpack.c.b16 %v1050, %v1049
  %v1095 = vpack.c.b16 %v1052, %v1051
  %v1096 = vpack.c.b16 %v1054, %v1053
  %v1097 = vpack.c.b16 %v1056, %v1055
  %v1098 = vpack.c.b16 %v1058, %v1057
  %v1099 = vpack.c.b16 %v1060, %v1059
  %v1100 = vpack.c.b16 %v1062, %v1061
  %v1101 = vpack.c.b16 %v1064, %v1063
  %v1102 = vpack.c.b16 %v1066, %v1065
  %v1103 = vpack.c.b16 %v1068, %v1067
  %v1104 = vpack.c.b16 %v1070, %v1069
  %v1105 = vpack.c.b16 %v1072, %v1071
  %v1106 = vpack.c.b16 %v1074, %v1073
  %v1107 = vpack.c.b16 %v1076, %v1075
  %v1108 = vpack.c.b16 %v1078, %v1077
  %v1109 = vpack.c.b16 %v1080, %v1079
  %v1110 = vpack.c.b16 %v1082, %v1081
  %v1111 = vpack.c.b16 %v1084, %v1083
  %v1112 = vpack.c.b16 %v1086, %v1085
  %v1113 = vpack.c.b16 %v1088, %v1087
  %v1114 = vpack.c.b16 %v1090, %v1089
  %1139 = vmatprep.subr.bf16.mxu0 0
  %1140 = vmatpush1.bf16.msra.mxu0 %v1091
  %1141 = vmatprep.subr.bf16.mxu0 0
  %1142 = vmatpush1.bf16.msra.mxu0 %v1092
  %1143 = vmatprep.subr.bf16.mxu0 0
  %1144 = vmatpush1.bf16.msra.mxu0 %v1093
  %1145 = vmatprep.subr.bf16.mxu0 0
  %1146 = vmatpush1.bf16.msra.mxu0 %v1094
  %1147 = vmatprep.subr.bf16.mxu0 0
  %1148 = vmatpush1.bf16.msra.mxu0 %v1095
  %1149 = vmatprep.subr.bf16.mxu0 0
  %1150 = vmatpush1.bf16.msra.mxu0 %v1096
  %1151 = vmatprep.subr.bf16.mxu0 0
  %1152 = vmatpush1.bf16.msra.mxu0 %v1097
  %1153 = vmatprep.subr.bf16.mxu0 0
  %1154 = vmatpush1.bf16.msra.mxu0 %v1098
  %1155 = vmatprep.subr.bf16.mxu0 0
  %1156 = vmatpush1.bf16.msra.mxu0 %v1099
  %1157 = vmatprep.subr.bf16.mxu0 0
  %1158 = vmatpush1.bf16.msra.mxu0 %v1100
  %1159 = vmatprep.subr.bf16.mxu0 0
  %1160 = vmatpush1.bf16.msra.mxu0 %v1101
  %1161 = vmatprep.subr.bf16.mxu0 0
  %1162 = vmatpush1.bf16.msra.mxu0 %v1102
  %1163 = vmatprep.subr.bf16.mxu0 0
  %1164 = vmatpush1.bf16.msra.mxu0 %v1103
  %1165 = vmatprep.subr.bf16.mxu0 0
  %1166 = vmatpush1.bf16.msra.mxu0 %v1104
  %1167 = vmatprep.subr.bf16.mxu0 0
  %1168 = vmatpush1.bf16.msra.mxu0 %v1105
  %1169 = vmatprep.subr.bf16.mxu0 0
  %1170 = vmatpush1.bf16.msra.mxu0 %v1106
  %1171 = vmatprep.mubr.bf16.mxu0 %v923
  %1172 = vmatmul.mubr.bf16.gmra.mrb[0].mxu0 %v922
  %v1173 = vpop.f32.mrb[0].mxu0
  %v1174 = vadd.f32 0.0, %v1173
  %v1175 = vpop.f32.mrb[0].mxu0
  %v1176 = vpop.f32.mrb[0].mxu0
  %v1177 = vadd.f32 0.0, %v1176
  %v1178 = vpop.f32.mrb[0].mxu0
  %1179 = vmatprep.mubr.bf16.mxu0 %v926
  %1180 = vmatmul.mubr.bf16.gmra.mrb[0].mxu0 %v925
  %v1181 = vpop.f32.mrb[0].mxu0
  %v1182 = vadd.f32 0.0, %v1181
  %v1183 = vpop.f32.mrb[0].mxu0
  %v1184 = vpop.f32.mrb[0].mxu0
  %v1185 = vadd.f32 0.0, %v1184
  %v1186 = vpop.f32.mrb[0].mxu0
  %1187 = vmatprep.mubr.bf16.mxu0 %v929
  %1188 = vmatmul.mubr.bf16.gmra.mrb[0].mxu0 %v928
  %v1189 = vpop.f32.mrb[0].mxu0
  %v1190 = vadd.f32 0.0, %v1189
  %v1191 = vpop.f32.mrb[0].mxu0
  %v1192 = vpop.f32.mrb[0].mxu0
  %v1193 = vadd.f32 0.0, %v1192
  %v1194 = vpop.f32.mrb[0].mxu0
  %1195 = vmatprep.mubr.bf16.mxu0 %v932
  %1196 = vmatmul.mubr.bf16.gmra.mrb[0].mxu0 %v931
  %v1197 = vpop.f32.mrb[0].mxu0
  %v1198 = vadd.f32 0.0, %v1197
  %v1199 = vpop.f32.mrb[0].mxu0
  %v1200 = vpop.f32.mrb[0].mxu0
  %v1201 = vadd.f32 0.0, %v1200
  %v1202 = vpop.f32.mrb[0].mxu0
  %1203 = vmatprep.mubr.bf16.mxu0 %v935
  %1204 = vmatmul.mubr.bf16.gmra.mrb[0].mxu0 %v934
  %v1205 = vpop.f32.mrb[0].mxu0
  %v1206 = vadd.f32 0.0, %v1205
  %v1207 = vpop.f32.mrb[0].mxu0
  %v1208 = vpop.f32.mrb[0].mxu0
  %v1209 = vadd.f32 0.0, %v1208
  %v1210 = vpop.f32.mrb[0].mxu0
  %1211 = vmatprep.mubr.bf16.mxu0 %v938
  %1212 = vmatmul.mubr.bf16.gmra.mrb[0].mxu0 %v937
  %v1213 = vpop.f32.mrb[0].mxu0
  %v1214 = vadd.f32 0.0, %v1213
  %v1215 = vpop.f32.mrb[0].mxu0
  %v1216 = vpop.f32.mrb[0].mxu0
  %v1217 = vadd.f32 0.0, %v1216
  %v1218 = vpop.f32.mrb[0].mxu0
  %1219 = vmatprep.mubr.bf16.mxu0 %v941
  %1220 = vmatmul.mubr.bf16.gmra.mrb[0].mxu0 %v940
  %v1221 = vpop.f32.mrb[0].mxu0
  %v1222 = vadd.f32 0.0, %v1221
  %v1223 = vpop.f32.mrb[0].mxu0
  %v1224 = vpop.f32.mrb[0].mxu0
  %v1225 = vadd.f32 0.0, %v1224
  %v1226 = vpop.f32.mrb[0].mxu0
  %1227 = vmatprep.mubr.bf16.mxu0 %v944
  %1228 = vmatmul.mubr.bf16.gmra.mrb[0].mxu0 %v943
  %v1229 = vpop.f32.mrb[0].mxu0
  %v1230 = vadd.f32 0.0, %v1229
  %v1231 = vpop.f32.mrb[0].mxu0
  %v1232 = vpop.f32.mrb[0].mxu0
  %v1233 = vadd.f32 0.0, %v1232
  %v1234 = vpop.f32.mrb[0].mxu0
  %1235 = vdwg.mxu0
  %1236 = vmatprep.subr.bf16.mxu0 0
  %1237 = vmatpush1.bf16.msra.mxu0 %v1107
  %1238 = vmatprep.subr.bf16.mxu0 0
  %1239 = vmatpush1.bf16.msra.mxu0 %v1108
  %1240 = vmatprep.subr.bf16.mxu0 0
  %1241 = vmatpush1.bf16.msra.mxu0 %v1109
  %1242 = vmatprep.subr.bf16.mxu0 0
  %1243 = vmatpush1.bf16.msra.mxu0 %v1110
  %1244 = vmatprep.subr.bf16.mxu0 0
  %1245 = vmatpush1.bf16.msra.mxu0 %v1111
  %1246 = vmatprep.subr.bf16.mxu0 0
  %1247 = vmatpush1.bf16.msra.mxu0 %v1112
  %1248 = vmatprep.subr.bf16.mxu0 0
  %1249 = vmatpush1.bf16.msra.mxu0 %v1113
  %1250 = vmatprep.subr.bf16.mxu0 0
  %1251 = vmatpush1.bf16.msra.mxu0 %v1114
  %1252 = vmatprep.subr.bf16.mxu0 0
  %1253 = vmatpush1.bf16.msra.mxu0 0
  %1254 = vmatprep.subr.bf16.mxu0 0
  %1255 = vmatpush1.bf16.msra.mxu0 0
  %1256 = vmatprep.subr.bf16.mxu0 0
  %1257 = vmatpush1.bf16.msra.mxu0 0
  %1258 = vmatprep.subr.bf16.mxu0 0
  %1259 = vmatpush1.bf16.msra.mxu0 0
  %1260 = vmatprep.subr.bf16.mxu0 0
  %1261 = vmatpush1.bf16.msra.mxu0 0
  %1262 = vmatprep.subr.bf16.mxu0 0
  %1263 = vmatpush1.bf16.msra.mxu0 0
  %1264 = vmatprep.subr.bf16.mxu0 0
  %1265 = vmatpush1.bf16.msra.mxu0 0
  %1266 = vmatprep.subr.bf16.mxu0 0
  %1267 = vmatpush1.bf16.msra.mxu0 0
  %1268 = vmatprep.mubr.bf16.mxu0 0
  %1269 = vmatmul.mubr.bf16.gmra.mrb[0].mxu0 %v924
  %v1270 = vpop.f32.mrb[0].mxu0
  %v1271 = vadd.f32 %v1174, %v1270
  %v1272 = vpop.f32.mrb[0].mxu0
  %v1273 = vpop.f32.mrb[0].mxu0
  %v1274 = vadd.f32 %v1177, %v1273
  %v1275 = vpop.f32.mrb[0].mxu0
  %1276 = vmatprep.mubr.bf16.mxu0 0
  %1277 = vmatmul.mubr.bf16.gmra.mrb[0].mxu0 %v927
  %v1278 = vpop.f32.mrb[0].mxu0
  %v1279 = vadd.f32 %v1182, %v1278
  %v1280 = vpop.f32.mrb[0].mxu0
  %v1281 = vpop.f32.mrb[0].mxu0
  %v1282 = vadd.f32 %v1185, %v1281
  %v1283 = vpop.f32.mrb[0].mxu0
  %1284 = vmatprep.mubr.bf16.mxu0 0
  %1285 = vmatmul.mubr.bf16.gmra.mrb[0].mxu0 %v930
  %v1286 = vpop.f32.mrb[0].mxu0
  %v1287 = vadd.f32 %v1190, %v1286
  %v1288 = vpop.f32.mrb[0].mxu0
  %v1289 = vpop.f32.mrb[0].mxu0
  %v1290 = vadd.f32 %v1193, %v1289
  %v1291 = vpop.f32.mrb[0].mxu0
  %1292 = vmatprep.mubr.bf16.mxu0 0
  %1293 = vmatmul.mubr.bf16.gmra.mrb[0].mxu0 %v933
  %v1294 = vpop.f32.mrb[0].mxu0
  %v1295 = vadd.f32 %v1198, %v1294
  %v1296 = vpop.f32.mrb[0].mxu0
  %v1297 = vpop.f32.mrb[0].mxu0
  %v1298 = vadd.f32 %v1201, %v1297
  %v1299 = vpop.f32.mrb[0].mxu0
  %1300 = vmatprep.mubr.bf16.mxu0 0
  %1301 = vmatmul.mubr.bf16.gmra.mrb[0].mxu0 %v936
  %v1302 = vpop.f32.mrb[0].mxu0
  %v1303 = vadd.f32 %v1206, %v1302
  %v1304 = vpop.f32.mrb[0].mxu0
  %v1305 = vpop.f32.mrb[0].mxu0
  %v1306 = vadd.f32 %v1209, %v1305
  %v1307 = vpop.f32.mrb[0].mxu0
  %1308 = vmatprep.mubr.bf16.mxu0 0
  %1309 = vmatmul.mubr.bf16.gmra.mrb[0].mxu0 %v939
  %v1310 = vpop.f32.mrb[0].mxu0
  %v1311 = vadd.f32 %v1214, %v1310
  %v1312 = vpop.f32.mrb[0].mxu0
  %v1313 = vpop.f32.mrb[0].mxu0
  %v1314 = vadd.f32 %v1217, %v1313
  %v1315 = vpop.f32.mrb[0].mxu0
  %1316 = vmatprep.mubr.bf16.mxu0 0
  %1317 = vmatmul.mubr.bf16.gmra.mrb[0].mxu0 %v942
  %v1318 = vpop.f32.mrb[0].mxu0
  %v1319 = vadd.f32 %v1222, %v1318
  %v1320 = vpop.f32.mrb[0].mxu0
  %v1321 = vpop.f32.mrb[0].mxu0
  %v1322 = vadd.f32 %v1225, %v1321
  %v1323 = vpop.f32.mrb[0].mxu0
  %1324 = vmatprep.mubr.bf16.mxu0 0
  %1325 = vmatmul.mubr.bf16.gmra.mrb[0].mxu0 %v945
  %v1326 = vpop.f32.mrb[0].mxu0
  %v1327 = vadd.f32 %v1230, %v1326
  %v1328 = vpop.f32.mrb[0].mxu0
  %v1329 = vpop.f32.mrb[0].mxu0
  %v1330 = vadd.f32 %v1233, %v1329
  %v1331 = vpop.f32.mrb[0].mxu0
  %1332 = vdwg.mxu0
  %v1381 = vunpack.c.l.b16 %v868
  %v1382 = vunpack.c.l.b16 %v869
  %v1383 = vunpack.c.l.b16 %v870
  %v1384 = vunpack.c.l.b16 %v871
  %v1385 = vunpack.c.l.b16 %v872
  %v1386 = vunpack.c.l.b16 %v873
  %v1387 = vunpack.c.l.b16 %v874
  %v1388 = vunpack.c.l.b16 %v875
  %v1389 = vunpack.c.l.b16 %v876
  %v1390 = vunpack.c.l.b16 %v877
  %v1391 = vunpack.c.l.b16 %v878
  %v1392 = vunpack.c.l.b16 %v879
  %v1393 = vunpack.c.l.b16 %v880
  %v1394 = vunpack.c.l.b16 %v881
  %v1395 = vunpack.c.l.b16 %v882
  %v1396 = vunpack.c.l.b16 %v883
  %v1397 = vunpack.c.l.b16 %v884
  %v1398 = vunpack.c.l.b16 %v885
  %v1399 = vunpack.c.l.b16 %v886
  %v1400 = vunpack.c.l.b16 %v887
  %v1401 = vunpack.c.l.b16 %v888
  %v1402 = vunpack.c.l.b16 %v889
  %v1403 = vunpack.c.l.b16 %v890
  %v1404 = vunpack.c.l.b16 %v891
  %v1405 = vunpack.c.l.b16 %v892
  %v1406 = vunpack.c.l.b16 %v893
  %v1407 = vunpack.c.l.b16 %v894
  %v1408 = vunpack.c.l.b16 %v895
  %v1409 = vunpack.c.l.b16 %v896
  %v1410 = vunpack.c.l.b16 %v897
  %v1411 = vunpack.c.l.b16 %v898
  %v1412 = vunpack.c.l.b16 %v899
  %v1413 = vunpack.c.l.b16 %v900
  %v1414 = vunpack.c.l.b16 %v901
  %v1415 = vunpack.c.l.b16 %v902
  %v1416 = vunpack.c.l.b16 %v903
  %v1417 = vunpack.c.l.b16 %v904
  %v1418 = vunpack.c.l.b16 %v905
  %v1419 = vunpack.c.l.b16 %v906
  %v1420 = vunpack.c.l.b16 %v907
  %v1421 = vunpack.c.l.b16 %v908
  %v1422 = vunpack.c.l.b16 %v909
  %v1423 = vunpack.c.l.b16 %v910
  %v1424 = vunpack.c.l.b16 %v911
  %v1425 = vunpack.c.l.b16 %v912
  %v1426 = vunpack.c.l.b16 %v913
  %v1427 = vunpack.c.l.b16 %v914
  %v1428 = vunpack.c.l.b16 %v915
  %v1429 = vpack.c.b16 %v1382, %v1381
  %v1430 = vpack.c.b16 %v1384, %v1383
  %v1431 = vpack.c.b16 %v1386, %v1385
  %v1432 = vpack.c.b16 %v1388, %v1387
  %v1433 = vpack.c.b16 %v1390, %v1389
  %v1434 = vpack.c.b16 %v1392, %v1391
  %v1435 = vpack.c.b16 %v1394, %v1393
  %v1436 = vpack.c.b16 %v1396, %v1395
  %v1437 = vpack.c.b16 %v1398, %v1397
  %v1438 = vpack.c.b16 %v1400, %v1399
  %v1439 = vpack.c.b16 %v1402, %v1401
  %v1440 = vpack.c.b16 %v1404, %v1403
  %v1441 = vpack.c.b16 %v1406, %v1405
  %v1442 = vpack.c.b16 %v1408, %v1407
  %v1443 = vpack.c.b16 %v1410, %v1409
  %v1444 = vpack.c.b16 %v1412, %v1411
  %v1445 = vpack.c.b16 %v1414, %v1413
  %v1446 = vpack.c.b16 %v1416, %v1415
  %v1447 = vpack.c.b16 %v1418, %v1417
  %v1448 = vpack.c.b16 %v1420, %v1419
  %v1449 = vpack.c.b16 %v1422, %v1421
  %v1450 = vpack.c.b16 %v1424, %v1423
  %v1451 = vpack.c.b16 %v1426, %v1425
  %v1452 = vpack.c.b16 %v1428, %v1427
  %1477 = vmatprep.subr.bf16.mxu0 0
  %1478 = vmatpush1.bf16.msra.mxu0 %v1429
  %1479 = vmatprep.subr.bf16.mxu0 0
  %1480 = vmatpush1.bf16.msra.mxu0 %v1430
  %1481 = vmatprep.subr.bf16.mxu0 0
  %1482 = vmatpush1.bf16.msra.mxu0 %v1431
  %1483 = vmatprep.subr.bf16.mxu0 0
  %1484 = vmatpush1.bf16.msra.mxu0 %v1432
  %1485 = vmatprep.subr.bf16.mxu0 0
  %1486 = vmatpush1.bf16.msra.mxu0 %v1433
  %1487 = vmatprep.subr.bf16.mxu0 0
  %1488 = vmatpush1.bf16.msra.mxu0 %v1434
  %1489 = vmatprep.subr.bf16.mxu0 0
  %1490 = vmatpush1.bf16.msra.mxu0 %v1435
  %1491 = vmatprep.subr.bf16.mxu0 0
  %1492 = vmatpush1.bf16.msra.mxu0 %v1436
  %1493 = vmatprep.subr.bf16.mxu0 0
  %1494 = vmatpush1.bf16.msra.mxu0 %v1437
  %1495 = vmatprep.subr.bf16.mxu0 0
  %1496 = vmatpush1.bf16.msra.mxu0 %v1438
  %1497 = vmatprep.subr.bf16.mxu0 0
  %1498 = vmatpush1.bf16.msra.mxu0 %v1439
  %1499 = vmatprep.subr.bf16.mxu0 0
  %1500 = vmatpush1.bf16.msra.mxu0 %v1440
  %1501 = vmatprep.subr.bf16.mxu0 0
  %1502 = vmatpush1.bf16.msra.mxu0 %v1441
  %1503 = vmatprep.subr.bf16.mxu0 0
  %1504 = vmatpush1.bf16.msra.mxu0 %v1442
  %1505 = vmatprep.subr.bf16.mxu0 0
  %1506 = vmatpush1.bf16.msra.mxu0 %v1443
  %1507 = vmatprep.subr.bf16.mxu0 0
  %1508 = vmatpush1.bf16.msra.mxu0 %v1444
  %1509 = vmatprep.mubr.bf16.mxu0 %v845
  %1510 = vmatmul.mubr.bf16.gmra.mrb[0].mxu0 %v844
  %v1511 = vpop.f32.mrb[0].mxu0
  %v1512 = vadd.f32 %v1271, %v1511
  %v1513 = vpop.f32.mrb[0].mxu0
  %v1514 = vpop.f32.mrb[0].mxu0
  %v1515 = vadd.f32 %v1274, %v1514
  %v1516 = vpop.f32.mrb[0].mxu0
  %1517 = vmatprep.mubr.bf16.mxu0 %v848
  %1518 = vmatmul.mubr.bf16.gmra.mrb[0].mxu0 %v847
  %v1519 = vpop.f32.mrb[0].mxu0
  %v1520 = vadd.f32 %v1279, %v1519
  %v1521 = vpop.f32.mrb[0].mxu0
  %v1522 = vpop.f32.mrb[0].mxu0
  %v1523 = vadd.f32 %v1282, %v1522
  %v1524 = vpop.f32.mrb[0].mxu0
  %1525 = vmatprep.mubr.bf16.mxu0 %v851
  %1526 = vmatmul.mubr.bf16.gmra.mrb[0].mxu0 %v850
  %v1527 = vpop.f32.mrb[0].mxu0
  %v1528 = vadd.f32 %v1287, %v1527
  %v1529 = vpop.f32.mrb[0].mxu0
  %v1530 = vpop.f32.mrb[0].mxu0
  %v1531 = vadd.f32 %v1290, %v1530
  %v1532 = vpop.f32.mrb[0].mxu0
  %1533 = vmatprep.mubr.bf16.mxu0 %v854
  %1534 = vmatmul.mubr.bf16.gmra.mrb[0].mxu0 %v853
  %v1535 = vpop.f32.mrb[0].mxu0
  %v1536 = vadd.f32 %v1295, %v1535
  %v1537 = vpop.f32.mrb[0].mxu0
  %v1538 = vpop.f32.mrb[0].mxu0
  %v1539 = vadd.f32 %v1298, %v1538
  %v1540 = vpop.f32.mrb[0].mxu0
  %1541 = vmatprep.mubr.bf16.mxu0 %v857
  %1542 = vmatmul.mubr.bf16.gmra.mrb[0].mxu0 %v856
  %v1543 = vpop.f32.mrb[0].mxu0
  %v1544 = vadd.f32 %v1303, %v1543
  %v1545 = vpop.f32.mrb[0].mxu0
  %v1546 = vpop.f32.mrb[0].mxu0
  %v1547 = vadd.f32 %v1306, %v1546
  %v1548 = vpop.f32.mrb[0].mxu0
  %1549 = vmatprep.mubr.bf16.mxu0 %v860
  %1550 = vmatmul.mubr.bf16.gmra.mrb[0].mxu0 %v859
  %v1551 = vpop.f32.mrb[0].mxu0
  %v1552 = vadd.f32 %v1311, %v1551
  %v1553 = vpop.f32.mrb[0].mxu0
  %v1554 = vpop.f32.mrb[0].mxu0
  %v1555 = vadd.f32 %v1314, %v1554
  %v1556 = vpop.f32.mrb[0].mxu0
  %1557 = vmatprep.mubr.bf16.mxu0 %v863
  %1558 = vmatmul.mubr.bf16.gmra.mrb[0].mxu0 %v862
  %v1559 = vpop.f32.mrb[0].mxu0
  %v1560 = vadd.f32 %v1319, %v1559
  %v1561 = vpop.f32.mrb[0].mxu0
  %v1562 = vpop.f32.mrb[0].mxu0
  %v1563 = vadd.f32 %v1322, %v1562
  %v1564 = vpop.f32.mrb[0].mxu0
  %1565 = vmatprep.mubr.bf16.mxu0 %v866
  %1566 = vmatmul.mubr.bf16.gmra.mrb[0].mxu0 %v865
  %v1567 = vpop.f32.mrb[0].mxu0
  %v1568 = vadd.f32 %v1327, %v1567
  %v1569 = vpop.f32.mrb[0].mxu0
  %v1570 = vpop.f32.mrb[0].mxu0
  %v1571 = vadd.f32 %v1330, %v1570
  %v1572 = vpop.f32.mrb[0].mxu0
  %1573 = vdwg.mxu0
  %1574 = vmatprep.subr.bf16.mxu0 0
  %1575 = vmatpush1.bf16.msra.mxu0 %v1445
  %1576 = vmatprep.subr.bf16.mxu0 0
  %1577 = vmatpush1.bf16.msra.mxu0 %v1446
  %1578 = vmatprep.subr.bf16.mxu0 0
  %1579 = vmatpush1.bf16.msra.mxu0 %v1447
  %1580 = vmatprep.subr.bf16.mxu0 0
  %1581 = vmatpush1.bf16.msra.mxu0 %v1448
  %1582 = vmatprep.subr.bf16.mxu0 0
  %1583 = vmatpush1.bf16.msra.mxu0 %v1449
  %1584 = vmatprep.subr.bf16.mxu0 0
  %1585 = vmatpush1.bf16.msra.mxu0 %v1450
  %1586 = vmatprep.subr.bf16.mxu0 0
  %1587 = vmatpush1.bf16.msra.mxu0 %v1451
  %1588 = vmatprep.subr.bf16.mxu0 0
  %1589 = vmatpush1.bf16.msra.mxu0 %v1452
  %1590 = vmatprep.subr.bf16.mxu0 0
  %1591 = vmatpush1.bf16.msra.mxu0 0
  %1592 = vmatprep.subr.bf16.mxu0 0
  %1593 = vmatpush1.bf16.msra.mxu0 0
  %1594 = vmatprep.subr.bf16.mxu0 0
  %1595 = vmatpush1.bf16.msra.mxu0 0
  %1596 = vmatprep.subr.bf16.mxu0 0
  %1597 = vmatpush1.bf16.msra.mxu0 0
  %1598 = vmatprep.subr.bf16.mxu0 0
  %1599 = vmatpush1.bf16.msra.mxu0 0
  %1600 = vmatprep.subr.bf16.mxu0 0
  %1601 = vmatpush1.bf16.msra.mxu0 0
  %1602 = vmatprep.subr.bf16.mxu0 0
  %1603 = vmatpush1.bf16.msra.mxu0 0
  %1604 = vmatprep.subr.bf16.mxu0 0
  %1605 = vmatpush1.bf16.msra.mxu0 0
  %1606 = vmatprep.mubr.bf16.mxu0 0
  %1607 = vmatmul.mubr.bf16.gmra.mrb[0].mxu0 %v846
  %v1608 = vpop.f32.mrb[0].mxu0
  %v1609 = vadd.f32 %v1512, %v1608
  %v1610 = vpop.f32.mrb[0].mxu0
  %v1611 = vpop.f32.mrb[0].mxu0
  %v1612 = vadd.f32 %v1515, %v1611
  %v1613 = vpop.f32.mrb[0].mxu0
  %1614 = vmatprep.mubr.bf16.mxu0 0
  %1615 = vmatmul.mubr.bf16.gmra.mrb[0].mxu0 %v849
  %v1616 = vpop.f32.mrb[0].mxu0
  %v1617 = vadd.f32 %v1520, %v1616
  %v1618 = vpop.f32.mrb[0].mxu0
  %v1619 = vpop.f32.mrb[0].mxu0
  %v1620 = vadd.f32 %v1523, %v1619
  %v1621 = vpop.f32.mrb[0].mxu0
  %1622 = vmatprep.mubr.bf16.mxu0 0
  %1623 = vmatmul.mubr.bf16.gmra.mrb[0].mxu0 %v852
  %v1624 = vpop.f32.mrb[0].mxu0
  %v1625 = vadd.f32 %v1528, %v1624
  %v1626 = vpop.f32.mrb[0].mxu0
  %v1627 = vpop.f32.mrb[0].mxu0
  %v1628 = vadd.f32 %v1531, %v1627
  %v1629 = vpop.f32.mrb[0].mxu0
  %1630 = vmatprep.mubr.bf16.mxu0 0
  %1631 = vmatmul.mubr.bf16.gmra.mrb[0].mxu0 %v855
  %v1632 = vpop.f32.mrb[0].mxu0
  %v1633 = vadd.f32 %v1536, %v1632
  %v1634 = vpop.f32.mrb[0].mxu0
  %v1635 = vpop.f32.mrb[0].mxu0
  %v1636 = vadd.f32 %v1539, %v1635
  %v1637 = vpop.f32.mrb[0].mxu0
  %1638 = vmatprep.mubr.bf16.mxu0 0
  %1639 = vmatmul.mubr.bf16.gmra.mrb[0].mxu0 %v858
  %v1640 = vpop.f32.mrb[0].mxu0
  %v1641 = vadd.f32 %v1544, %v1640
  %v1642 = vpop.f32.mrb[0].mxu0
  %v1643 = vpop.f32.mrb[0].mxu0
  %v1644 = vadd.f32 %v1547, %v1643
  %v1645 = vpop.f32.mrb[0].mxu0
  %1646 = vmatprep.mubr.bf16.mxu0 0
  %1647 = vmatmul.mubr.bf16.gmra.mrb[0].mxu0 %v861
  %v1648 = vpop.f32.mrb[0].mxu0
  %v1649 = vadd.f32 %v1552, %v1648
  %v1650 = vpop.f32.mrb[0].mxu0
  %v1651 = vpop.f32.mrb[0].mxu0
  %v1652 = vadd.f32 %v1555, %v1651
  %v1653 = vpop.f32.mrb[0].mxu0
  %1654 = vmatprep.mubr.bf16.mxu0 0
  %1655 = vmatmul.mubr.bf16.gmra.mrb[0].mxu0 %v864
  %v1656 = vpop.f32.mrb[0].mxu0
  %v1657 = vadd.f32 %v1560, %v1656
  %v1658 = vpop.f32.mrb[0].mxu0
  %v1659 = vpop.f32.mrb[0].mxu0
  %v1660 = vadd.f32 %v1563, %v1659
  %v1661 = vpop.f32.mrb[0].mxu0
  %1662 = vmatprep.mubr.bf16.mxu0 0
  %1663 = vmatmul.mubr.bf16.gmra.mrb[0].mxu0 %v867
  %v1664 = vpop.f32.mrb[0].mxu0
  %v1665 = vadd.f32 %v1568, %v1664
  %v1666 = vpop.f32.mrb[0].mxu0
  %v1667 = vpop.f32.mrb[0].mxu0
  %v1668 = vadd.f32 %v1571, %v1667
  %v1669 = vpop.f32.mrb[0].mxu0
  %1670 = vdwg.mxu0
  %v1671 = vld [vmem:[#allocation2 + $0x30] sm:$0xff]
  %v1672 = vld [vmem:[#allocation2 + $0x38] sm:$0xff]
  %v1673 = vld [vmem:[#allocation2 + $0x40] sm:$0xff]
  %v1674 = vld [vmem:[#allocation2 + $0x48] sm:$0xff]
  %v1675 = vld [vmem:[#allocation2 + $0x50] sm:$0xff]
  %v1676 = vld [vmem:[#allocation2 + $0x58] sm:$0xff]
  %v1677 = vld [vmem:[#allocation2 + $0x60] sm:$0xff]
  %v1678 = vld [vmem:[#allocation2 + $0x68] sm:$0xff]
  %v1679 = vld [vmem:[#allocation2 + $0x70] sm:$0xff]
  %v1680 = vld [vmem:[#allocation2 + $0x78] sm:$0xff]
  %v1681 = vld [vmem:[#allocation2 + $0x80] sm:$0xff]
  %v1682 = vld [vmem:[#allocation2 + $0x88] sm:$0xff]
  %v1683 = vld [vmem:[#allocation2 + $0x90] sm:$0xff]
  %v1684 = vld [vmem:[#allocation2 + $0x98] sm:$0xff]
  %v1685 = vld [vmem:[#allocation2 + $0xa0] sm:$0xff]
  %v1686 = vld [vmem:[#allocation2 + $0xa8] sm:$0xff]
  %v1687 = vld [vmem:[#allocation2 + $0xb0] sm:$0xff]
  %v1688 = vld [vmem:[#allocation2 + $0xb8] sm:$0xff]
  %v1689 = vld [vmem:[#allocation2 + $0xc0] sm:$0xff]
  %v1690 = vld [vmem:[#allocation2 + $0xc8] sm:$0xff]
  %v1691 = vld [vmem:[#allocation2 + $0xd0] sm:$0xff]
  %v1692 = vld [vmem:[#allocation2 + $0xd8] sm:$0xff]
  %v1693 = vld [vmem:[#allocation2 + $0xe0] sm:$0xff]
  %v1694 = vld [vmem:[#allocation2 + $0xe8] sm:$0xff]
  %v1695 = vld [vmem:[#allocation2 + $0x120] sm:$0xff]
  %v1696 = vld [vmem:[#allocation2 + $0x128] sm:$0xff]
  %v1697 = vld [vmem:[#allocation2 + $0x130] sm:$0xff]
  %v1698 = vld [vmem:[#allocation2 + $0x138] sm:$0xff]
  %v1699 = vld [vmem:[#allocation2 + $0x140] sm:$0xff]
  %v1700 = vld [vmem:[#allocation2 + $0x148] sm:$0xff]
  %v1701 = vld [vmem:[#allocation2 + $0x150] sm:$0xff]
  %v1702 = vld [vmem:[#allocation2 + $0x158] sm:$0xff]
  %v1703 = vld [vmem:[#allocation2 + $0x160] sm:$0xff]
  %v1704 = vld [vmem:[#allocation2 + $0x168] sm:$0xff]
  %v1705 = vld [vmem:[#allocation2 + $0x170] sm:$0xff]
  %v1706 = vld [vmem:[#allocation2 + $0x178] sm:$0xff]
  %v1707 = vld [vmem:[#allocation2 + $0x180] sm:$0xff]
  %v1708 = vld [vmem:[#allocation2 + $0x188] sm:$0xff]
  %v1709 = vld [vmem:[#allocation2 + $0x190] sm:$0xff]
  %v1710 = vld [vmem:[#allocation2 + $0x198] sm:$0xff]
  %v1711 = vld [vmem:[#allocation2 + $0x1a0] sm:$0xff]
  %v1712 = vld [vmem:[#allocation2 + $0x1a8] sm:$0xff]
  %v1713 = vld [vmem:[#allocation2 + $0x1b0] sm:$0xff]
  %v1714 = vld [vmem:[#allocation2 + $0x1b8] sm:$0xff]
  %v1715 = vld [vmem:[#allocation2 + $0x1c0] sm:$0xff]
  %v1716 = vld [vmem:[#allocation2 + $0x1c8] sm:$0xff]
  %v1717 = vld [vmem:[#allocation2 + $0x1d0] sm:$0xff]
  %v1718 = vld [vmem:[#allocation2 + $0x1d8] sm:$0xff]
  %v1719 = vpack.c.bf16 %v1674, %v1671
  %v1720 = vpack.c.bf16 %v1675, %v1672
  %v1721 = vpack.c.bf16 %v1676, %v1673
  %v1722 = vpack.c.bf16 %v1680, %v1677
  %v1723 = vpack.c.bf16 %v1681, %v1678
  %v1724 = vpack.c.bf16 %v1682, %v1679
  %v1725 = vpack.c.bf16 %v1686, %v1683
  %v1726 = vpack.c.bf16 %v1687, %v1684
  %v1727 = vpack.c.bf16 %v1688, %v1685
  %v1728 = vpack.c.bf16 %v1692, %v1689
  %v1729 = vpack.c.bf16 %v1693, %v1690
  %v1730 = vpack.c.bf16 %v1694, %v1691
  %v1731 = vpack.c.bf16 %v1698, %v1695
  %v1732 = vpack.c.bf16 %v1699, %v1696
  %v1733 = vpack.c.bf16 %v1700, %v1697
  %v1734 = vpack.c.bf16 %v1704, %v1701
  %v1735 = vpack.c.bf16 %v1705, %v1702
  %v1736 = vpack.c.bf16 %v1706, %v1703
  %v1737 = vpack.c.bf16 %v1710, %v1707
  %v1738 = vpack.c.bf16 %v1711, %v1708
  %v1739 = vpack.c.bf16 %v1712, %v1709
  %v1740 = vpack.c.bf16 %v1716, %v1713
  %v1741 = vpack.c.bf16 %v1717, %v1714
  %v1742 = vpack.c.bf16 %v1718, %v1715
  %s1743 = scalar_lea.vmem %s2, 384
  %v1744 = vld [vmem:[%s1743] sm:$0xf]
  %v1745 = vld [vmem:[%s1743 + $0x4] sm:$0xf]
  %v1746 = vld [vmem:[%s1743 + $0x8] sm:$0xf]
  %v1747 = vld [vmem:[%s1743 + $0xc] sm:$0xf]
  %v1748 = vld [vmem:[%s1743 + $0x10] sm:$0xf]
  %v1749 = vld [vmem:[%s1743 + $0x14] sm:$0xf]
  %v1750 = vld [vmem:[%s1743 + $0x18] sm:$0xf]
  %v1751 = vld [vmem:[%s1743 + $0x1c] sm:$0xf]
  %v1752 = vld [vmem:[%s1743 + $0x20] sm:$0xf]
  %v1753 = vld [vmem:[%s1743 + $0x24] sm:$0xf]
  %v1754 = vld [vmem:[%s1743 + $0x28] sm:$0xf]
  %v1755 = vld [vmem:[%s1743 + $0x2c] sm:$0xf]
  %v1756 = vld [vmem:[%s1743 + $0x30] sm:$0xf]
  %v1757 = vld [vmem:[%s1743 + $0x34] sm:$0xf]
  %v1758 = vld [vmem:[%s1743 + $0x38] sm:$0xf]
  %v1759 = vld [vmem:[%s1743 + $0x3c] sm:$0xf]
  %v1760 = vld [vmem:[%s1743 + $0x40] sm:$0xf]
  %v1761 = vld [vmem:[%s1743 + $0x44] sm:$0xf]
  %v1762 = vld [vmem:[%s1743 + $0x48] sm:$0xf]
  %v1763 = vld [vmem:[%s1743 + $0x4c] sm:$0xf]
  %v1764 = vld [vmem:[%s1743 + $0x50] sm:$0xf]
  %v1765 = vld [vmem:[%s1743 + $0x54] sm:$0xf]
  %v1766 = vld [vmem:[%s1743 + $0x58] sm:$0xf]
  %v1767 = vld [vmem:[%s1743 + $0x5c] sm:$0xf]
  %v1768 = vld [vmem:[%s1743 + $0x60] sm:$0xf]
  %v1769 = vld [vmem:[%s1743 + $0x64] sm:$0xf]
  %v1770 = vld [vmem:[%s1743 + $0x68] sm:$0xf]
  %v1771 = vld [vmem:[%s1743 + $0x6c] sm:$0xf]
  %v1772 = vld [vmem:[%s1743 + $0x70] sm:$0xf]
  %v1773 = vld [vmem:[%s1743 + $0x74] sm:$0xf]
  %v1774 = vld [vmem:[%s1743 + $0x78] sm:$0xf]
  %v1775 = vld [vmem:[%s1743 + $0x7c] sm:$0xf]
  %v1776 = vld [vmem:[%s1743 + $0x80] sm:$0xf]
  %v1777 = vld [vmem:[%s1743 + $0x84] sm:$0xf]
  %v1778 = vld [vmem:[%s1743 + $0x88] sm:$0xf]
  %v1779 = vld [vmem:[%s1743 + $0x8c] sm:$0xf]
  %v1780 = vld [vmem:[%s1743 + $0x90] sm:$0xf]
  %v1781 = vld [vmem:[%s1743 + $0x94] sm:$0xf]
  %v1782 = vld [vmem:[%s1743 + $0x98] sm:$0xf]
  %v1783 = vld [vmem:[%s1743 + $0x9c] sm:$0xf]
  %v1784 = vld [vmem:[%s1743 + $0xa0] sm:$0xf]
  %v1785 = vld [vmem:[%s1743 + $0xa4] sm:$0xf]
  %v1786 = vld [vmem:[%s1743 + $0xa8] sm:$0xf]
  %v1787 = vld [vmem:[%s1743 + $0xac] sm:$0xf]
  %v1788 = vld [vmem:[%s1743 + $0xb0] sm:$0xf]
  %v1789 = vld [vmem:[%s1743 + $0xb4] sm:$0xf]
  %v1790 = vld [vmem:[%s1743 + $0xb8] sm:$0xf]
  %v1791 = vld [vmem:[%s1743 + $0xbc] sm:$0xf]
  %v1840 = vunpack.c.l.b16 %v1744
  %v1841 = vunpack.c.l.b16 %v1745
  %v1842 = vunpack.c.l.b16 %v1746
  %v1843 = vunpack.c.l.b16 %v1747
  %v1844 = vunpack.c.l.b16 %v1748
  %v1845 = vunpack.c.l.b16 %v1749
  %v1846 = vunpack.c.l.b16 %v1750
  %v1847 = vunpack.c.l.b16 %v1751
  %v1848 = vunpack.c.l.b16 %v1752
  %v1849 = vunpack.c.l.b16 %v1753
  %v1850 = vunpack.c.l.b16 %v1754
  %v1851 = vunpack.c.l.b16 %v1755
  %v1852 = vunpack.c.l.b16 %v1756
  %v1853 = vunpack.c.l.b16 %v1757
  %v1854 = vunpack.c.l.b16 %v1758
  %v1855 = vunpack.c.l.b16 %v1759
  %v1856 = vunpack.c.l.b16 %v1760
  %v1857 = vunpack.c.l.b16 %v1761
  %v1858 = vunpack.c.l.b16 %v1762
  %v1859 = vunpack.c.l.b16 %v1763
  %v1860 = vunpack.c.l.b16 %v1764
  %v1861 = vunpack.c.l.b16 %v1765
  %v1862 = vunpack.c.l.b16 %v1766
  %v1863 = vunpack.c.l.b16 %v1767
  %v1864 = vunpack.c.l.b16 %v1768
  %v1865 = vunpack.c.l.b16 %v1769
  %v1866 = vunpack.c.l.b16 %v1770
  %v1867 = vunpack.c.l.b16 %v1771
  %v1868 = vunpack.c.l.b16 %v1772
  %v1869 = vunpack.c.l.b16 %v1773
  %v1870 = vunpack.c.l.b16 %v1774
  %v1871 = vunpack.c.l.b16 %v1775
  %v1872 = vunpack.c.l.b16 %v1776
  %v1873 = vunpack.c.l.b16 %v1777
  %v1874 = vunpack.c.l.b16 %v1778
  %v1875 = vunpack.c.l.b16 %v1779
  %v1876 = vunpack.c.l.b16 %v1780
  %v1877 = vunpack.c.l.b16 %v1781
  %v1878 = vunpack.c.l.b16 %v1782
  %v1879 = vunpack.c.l.b16 %v1783
  %v1880 = vunpack.c.l.b16 %v1784
  %v1881 = vunpack.c.l.b16 %v1785
  %v1882 = vunpack.c.l.b16 %v1786
  %v1883 = vunpack.c.l.b16 %v1787
  %v1884 = vunpack.c.l.b16 %v1788
  %v1885 = vunpack.c.l.b16 %v1789
  %v1886 = vunpack.c.l.b16 %v1790
  %v1887 = vunpack.c.l.b16 %v1791
  %v1888 = vpack.c.b16 %v1841, %v1840
  %v1889 = vpack.c.b16 %v1843, %v1842
  %v1890 = vpack.c.b16 %v1845, %v1844
  %v1891 = vpack.c.b16 %v1847, %v1846
  %v1892 = vpack.c.b16 %v1849, %v1848
  %v1893 = vpack.c.b16 %v1851, %v1850
  %v1894 = vpack.c.b16 %v1853, %v1852
  %v1895 = vpack.c.b16 %v1855, %v1854
  %v1896 = vpack.c.b16 %v1857, %v1856
  %v1897 = vpack.c.b16 %v1859, %v1858
  %v1898 = vpack.c.b16 %v1861, %v1860
  %v1899 = vpack.c.b16 %v1863, %v1862
  %v1900 = vpack.c.b16 %v1865, %v1864
  %v1901 = vpack.c.b16 %v1867, %v1866
  %v1902 = vpack.c.b16 %v1869, %v1868
  %v1903 = vpack.c.b16 %v1871, %v1870
  %v1904 = vpack.c.b16 %v1873, %v1872
  %v1905 = vpack.c.b16 %v1875, %v1874
  %v1906 = vpack.c.b16 %v1877, %v1876
  %v1907 = vpack.c.b16 %v1879, %v1878
  %v1908 = vpack.c.b16 %v1881, %v1880
  %v1909 = vpack.c.b16 %v1883, %v1882
  %v1910 = vpack.c.b16 %v1885, %v1884
  %v1911 = vpack.c.b16 %v1887, %v1886
  %1936 = vmatprep.subr.bf16.mxu0 0
  %1937 = vmatpush1.bf16.msra.mxu0 %v1888
  %1938 = vmatprep.subr.bf16.mxu0 0
  %1939 = vmatpush1.bf16.msra.mxu0 %v1889
  %1940 = vmatprep.subr.bf16.mxu0 0
  %1941 = vmatpush1.bf16.msra.mxu0 %v1890
  %1942 = vmatprep.subr.bf16.mxu0 0
  %1943 = vmatpush1.bf16.msra.mxu0 %v1891
  %1944 = vmatprep.subr.bf16.mxu0 0
  %1945 = vmatpush1.bf16.msra.mxu0 %v1892
  %1946 = vmatprep.subr.bf16.mxu0 0
  %1947 = vmatpush1.bf16.msra.mxu0 %v1893
  %1948 = vmatprep.subr.bf16.mxu0 0
  %1949 = vmatpush1.bf16.msra.mxu0 %v1894
  %1950 = vmatprep.subr.bf16.mxu0 0
  %1951 = vmatpush1.bf16.msra.mxu0 %v1895
  %1952 = vmatprep.subr.bf16.mxu0 0
  %1953 = vmatpush1.bf16.msra.mxu0 %v1896
  %1954 = vmatprep.subr.bf16.mxu0 0
  %1955 = vmatpush1.bf16.msra.mxu0 %v1897
  %1956 = vmatprep.subr.bf16.mxu0 0
  %1957 = vmatpush1.bf16.msra.mxu0 %v1898
  %1958 = vmatprep.subr.bf16.mxu0 0
  %1959 = vmatpush1.bf16.msra.mxu0 %v1899
  %1960 = vmatprep.subr.bf16.mxu0 0
  %1961 = vmatpush1.bf16.msra.mxu0 %v1900
  %1962 = vmatprep.subr.bf16.mxu0 0
  %1963 = vmatpush1.bf16.msra.mxu0 %v1901
  %1964 = vmatprep.subr.bf16.mxu0 0
  %1965 = vmatpush1.bf16.msra.mxu0 %v1902
  %1966 = vmatprep.subr.bf16.mxu0 0
  %1967 = vmatpush1.bf16.msra.mxu0 %v1903
  %1968 = vmatprep.mubr.bf16.mxu0 %v1720
  %1969 = vmatmul.mubr.bf16.gmra.mrb[0].mxu0 %v1719
  %v1970 = vpop.f32.mrb[0].mxu0
  %v1971 = vadd.f32 0.0, %v1970
  %v1972 = vpop.f32.mrb[0].mxu0
  %v1973 = vpop.f32.mrb[0].mxu0
  %v1974 = vadd.f32 0.0, %v1973
  %v1975 = vpop.f32.mrb[0].mxu0
  %1976 = vmatprep.mubr.bf16.mxu0 %v1723
  %1977 = vmatmul.mubr.bf16.gmra.mrb[0].mxu0 %v1722
  %v1978 = vpop.f32.mrb[0].mxu0
  %v1979 = vadd.f32 0.0, %v1978
  %v1980 = vpop.f32.mrb[0].mxu0
  %v1981 = vpop.f32.mrb[0].mxu0
  %v1982 = vadd.f32 0.0, %v1981
  %v1983 = vpop.f32.mrb[0].mxu0
  %1984 = vmatprep.mubr.bf16.mxu0 %v1726
  %1985 = vmatmul.mubr.bf16.gmra.mrb[0].mxu0 %v1725
  %v1986 = vpop.f32.mrb[0].mxu0
  %v1987 = vadd.f32 0.0, %v1986
  %v1988 = vpop.f32.mrb[0].mxu0
  %v1989 = vpop.f32.mrb[0].mxu0
  %v1990 = vadd.f32 0.0, %v1989
  %v1991 = vpop.f32.mrb[0].mxu0
  %1992 = vmatprep.mubr.bf16.mxu0 %v1729
  %1993 = vmatmul.mubr.bf16.gmra.mrb[0].mxu0 %v1728
  %v1994 = vpop.f32.mrb[0].mxu0
  %v1995 = vadd.f32 0.0, %v1994
  %v1996 = vpop.f32.mrb[0].mxu0
  %v1997 = vpop.f32.mrb[0].mxu0
  %v1998 = vadd.f32 0.0, %v1997
  %v1999 = vpop.f32.mrb[0].mxu0
  %2000 = vmatprep.mubr.bf16.mxu0 %v1732
  %2001 = vmatmul.mubr.bf16.gmra.mrb[0].mxu0 %v1731
  %v2002 = vpop.f32.mrb[0].mxu0
  %v2003 = vadd.f32 0.0, %v2002
  %v2004 = vpop.f32.mrb[0].mxu0
  %v2005 = vpop.f32.mrb[0].mxu0
  %v2006 = vadd.f32 0.0, %v2005
  %v2007 = vpop.f32.mrb[0].mxu0
  %2008 = vmatprep.mubr.bf16.mxu0 %v1735
  %2009 = vmatmul.mubr.bf16.gmra.mrb[0].mxu0 %v1734
  %v2010 = vpop.f32.mrb[0].mxu0
  %v2011 = vadd.f32 0.0, %v2010
  %v2012 = vpop.f32.mrb[0].mxu0
  %v2013 = vpop.f32.mrb[0].mxu0
  %v2014 = vadd.f32 0.0, %v2013
  %v2015 = vpop.f32.mrb[0].mxu0
  %2016 = vmatprep.mubr.bf16.mxu0 %v1738
  %2017 = vmatmul.mubr.bf16.gmra.mrb[0].mxu0 %v1737
  %v2018 = vpop.f32.mrb[0].mxu0
  %v2019 = vadd.f32 0.0, %v2018
  %v2020 = vpop.f32.mrb[0].mxu0
  %v2021 = vpop.f32.mrb[0].mxu0
  %v2022 = vadd.f32 0.0, %v2021
  %v2023 = vpop.f32.mrb[0].mxu0
  %2024 = vmatprep.mubr.bf16.mxu0 %v1741
  %2025 = vmatmul.mubr.bf16.gmra.mrb[0].mxu0 %v1740
  %v2026 = vpop.f32.mrb[0].mxu0
  %v2027 = vadd.f32 0.0, %v2026
  %v2028 = vpop.f32.mrb[0].mxu0
  %v2029 = vpop.f32.mrb[0].mxu0
  %v2030 = vadd.f32 0.0, %v2029
  %v2031 = vpop.f32.mrb[0].mxu0
  %2032 = vdwg.mxu0
  %2033 = vmatprep.subr.bf16.mxu0 0
  %2034 = vmatpush1.bf16.msra.mxu0 %v1904
  %2035 = vmatprep.subr.bf16.mxu0 0
  %2036 = vmatpush1.bf16.msra.mxu0 %v1905
  %2037 = vmatprep.subr.bf16.mxu0 0
  %2038 = vmatpush1.bf16.msra.mxu0 %v1906
  %2039 = vmatprep.subr.bf16.mxu0 0
  %2040 = vmatpush1.bf16.msra.mxu0 %v1907
  %2041 = vmatprep.subr.bf16.mxu0 0
  %2042 = vmatpush1.bf16.msra.mxu0 %v1908
  %2043 = vmatprep.subr.bf16.mxu0 0
  %2044 = vmatpush1.bf16.msra.mxu0 %v1909
  %2045 = vmatprep.subr.bf16.mxu0 0
  %2046 = vmatpush1.bf16.msra.mxu0 %v1910
  %2047 = vmatprep.subr.bf16.mxu0 0
  %2048 = vmatpush1.bf16.msra.mxu0 %v1911
  %2049 = vmatprep.subr.bf16.mxu0 0
  %2050 = vmatpush1.bf16.msra.mxu0 0
  %2051 = vmatprep.subr.bf16.mxu0 0
  %2052 = vmatpush1.bf16.msra.mxu0 0
  %2053 = vmatprep.subr.bf16.mxu0 0
  %2054 = vmatpush1.bf16.msra.mxu0 0
  %2055 = vmatprep.subr.bf16.mxu0 0
  %2056 = vmatpush1.bf16.msra.mxu0 0
  %2057 = vmatprep.subr.bf16.mxu0 0
  %2058 = vmatpush1.bf16.msra.mxu0 0
  %2059 = vmatprep.subr.bf16.mxu0 0
  %2060 = vmatpush1.bf16.msra.mxu0 0
  %2061 = vmatprep.subr.bf16.mxu0 0
  %2062 = vmatpush1.bf16.msra.mxu0 0
  %2063 = vmatprep.subr.bf16.mxu0 0
  %2064 = vmatpush1.bf16.msra.mxu0 0
  %2065 = vmatprep.mubr.bf16.mxu0 0
  %2066 = vmatmul.mubr.bf16.gmra.mrb[0].mxu0 %v1721
  %v2067 = vpop.f32.mrb[0].mxu0
  %v2068 = vadd.f32 %v1971, %v2067
  %v2069 = vpop.f32.mrb[0].mxu0
  %v2070 = vpop.f32.mrb[0].mxu0
  %v2071 = vadd.f32 %v1974, %v2070
  %v2072 = vpop.f32.mrb[0].mxu0
  %2073 = vmatprep.mubr.bf16.mxu0 0
  %2074 = vmatmul.mubr.bf16.gmra.mrb[0].mxu0 %v1724
  %v2075 = vpop.f32.mrb[0].mxu0
  %v2076 = vadd.f32 %v1979, %v2075
  %v2077 = vpop.f32.mrb[0].mxu0
  %v2078 = vpop.f32.mrb[0].mxu0
  %v2079 = vadd.f32 %v1982, %v2078
  %v2080 = vpop.f32.mrb[0].mxu0
  %2081 = vmatprep.mubr.bf16.mxu0 0
  %2082 = vmatmul.mubr.bf16.gmra.mrb[0].mxu0 %v1727
  %v2083 = vpop.f32.mrb[0].mxu0
  %v2084 = vadd.f32 %v1987, %v2083
  %v2085 = vpop.f32.mrb[0].mxu0
  %v2086 = vpop.f32.mrb[0].mxu0
  %v2087 = vadd.f32 %v1990, %v2086
  %v2088 = vpop.f32.mrb[0].mxu0
  %2089 = vmatprep.mubr.bf16.mxu0 0
  %2090 = vmatmul.mubr.bf16.gmra.mrb[0].mxu0 %v1730
  %v2091 = vpop.f32.mrb[0].mxu0
  %v2092 = vadd.f32 %v1995, %v2091
  %v2093 = vpop.f32.mrb[0].mxu0
  %v2094 = vpop.f32.mrb[0].mxu0
  %v2095 = vadd.f32 %v1998, %v2094
  %v2096 = vpop.f32.mrb[0].mxu0
  %2097 = vmatprep.mubr.bf16.mxu0 0
  %2098 = vmatmul.mubr.bf16.gmra.mrb[0].mxu0 %v1733
  %v2099 = vpop.f32.mrb[0].mxu0
  %v2100 = vadd.f32 %v2003, %v2099
  %v2101 = vpop.f32.mrb[0].mxu0
  %v2102 = vpop.f32.mrb[0].mxu0
  %v2103 = vadd.f32 %v2006, %v2102
  %v2104 = vpop.f32.mrb[0].mxu0
  %2105 = vmatprep.mubr.bf16.mxu0 0
  %2106 = vmatmul.mubr.bf16.gmra.mrb[0].mxu0 %v1736
  %v2107 = vpop.f32.mrb[0].mxu0
  %v2108 = vadd.f32 %v2011, %v2107
  %v2109 = vpop.f32.mrb[0].mxu0
  %v2110 = vpop.f32.mrb[0].mxu0
  %v2111 = vadd.f32 %v2014, %v2110
  %v2112 = vpop.f32.mrb[0].mxu0
  %2113 = vmatprep.mubr.bf16.mxu0 0
  %2114 = vmatmul.mubr.bf16.gmra.mrb[0].mxu0 %v1739
  %v2115 = vpop.f32.mrb[0].mxu0
  %v2116 = vadd.f32 %v2019, %v2115
  %v2117 = vpop.f32.mrb[0].mxu0
  %v2118 = vpop.f32.mrb[0].mxu0
  %v2119 = vadd.f32 %v2022, %v2118
  %v2120 = vpop.f32.mrb[0].mxu0
  %2121 = vmatprep.mubr.bf16.mxu0 0
  %2122 = vmatmul.mubr.bf16.gmra.mrb[0].mxu0 %v1742
  %v2123 = vpop.f32.mrb[0].mxu0
  %v2124 = vadd.f32 %v2027, %v2123
  %v2125 = vpop.f32.mrb[0].mxu0
  %v2126 = vpop.f32.mrb[0].mxu0
  %v2127 = vadd.f32 %v2030, %v2126
  %v2128 = vpop.f32.mrb[0].mxu0
  %2129 = vdwg.mxu0
  %v2130 = vadd.f32 %v1609, %v2068
  %v2131 = vadd.f32 %v1612, %v2071
  %v2132 = vadd.f32 %v1617, %v2076
  %v2133 = vadd.f32 %v1620, %v2079
  %v2134 = vadd.f32 %v1625, %v2084
  %v2135 = vadd.f32 %v1628, %v2087
  %v2136 = vadd.f32 %v1633, %v2092
  %v2137 = vadd.f32 %v1636, %v2095
  %v2138 = vadd.f32 %v1641, %v2100
  %v2139 = vadd.f32 %v1644, %v2103
  %v2140 = vadd.f32 %v1649, %v2108
  %v2141 = vadd.f32 %v1652, %v2111
  %v2142 = vadd.f32 %v1657, %v2116
  %v2143 = vadd.f32 %v1660, %v2119
  %v2144 = vadd.f32 %v1665, %v2124
  %v2145 = vadd.f32 %v1668, %v2127
  %v2146 = vadd.f32 %v2130, %v2131
  %v2147 = vadd.f32 %v2146, %v2132
  %v2148 = vadd.f32 %v2147, %v2133
  %v2149 = vadd.f32 %v2148, %v2134
  %v2150 = vadd.f32 %v2149, %v2135
  %v2151 = vadd.f32 %v2150, %v2136
  %v2152 = vadd.f32 %v2151, %v2137
  %v2153 = vadd.f32 %v2152, %v2138
  %v2154 = vadd.f32 %v2153, %v2139
  %v2155 = vadd.f32 %v2154, %v2140
  %v2156 = vadd.f32 %v2155, %v2141
  %v2157 = vadd.f32 %v2156, %v2142
  %v2158 = vadd.f32 %v2157, %v2143
  %v2159 = vadd.f32 %v2158, %v2144
  %v2160 = vadd.f32 %v2159, %v2145
  %v2161 = vrot.slane %v2160, 4
  %v2162 = vadd.f32 %v2160, %v2161
  %v2163 = vrot.slane %v2162, 2
  %v2164 = vadd.f32 %v2162, %v2163
  %v2165 = vrot.slane %v2164, 1
  %v2166 = vadd.f32 %v2164, %v2165
  %v2167 = vmul.f32 %v2166, 0.0078125
  %v2168 = vmul.f32 %v2130, %v2130
  %v2169 = vmul.f32 %v2131, %v2131
  %v2170 = vmul.f32 %v2132, %v2132
  %v2171 = vmul.f32 %v2133, %v2133
  %v2172 = vmul.f32 %v2134, %v2134
  %v2173 = vmul.f32 %v2135, %v2135
  %v2174 = vmul.f32 %v2136, %v2136
  %v2175 = vmul.f32 %v2137, %v2137
  %v2176 = vmul.f32 %v2138, %v2138
  %v2177 = vmul.f32 %v2139, %v2139
  %v2178 = vmul.f32 %v2140, %v2140
  %v2179 = vmul.f32 %v2141, %v2141
  %v2180 = vmul.f32 %v2142, %v2142
  %v2181 = vmul.f32 %v2143, %v2143
  %v2182 = vmul.f32 %v2144, %v2144
  %v2183 = vmul.f32 %v2145, %v2145
  %v2184 = vadd.f32 %v2168, %v2169
  %v2185 = vadd.f32 %v2184, %v2170
  %v2186 = vadd.f32 %v2185, %v2171
  %v2187 = vadd.f32 %v2186, %v2172
  %v2188 = vadd.f32 %v2187, %v2173
  %v2189 = vadd.f32 %v2188, %v2174
  %v2190 = vadd.f32 %v2189, %v2175
  %v2191 = vadd.f32 %v2190, %v2176
  %v2192 = vadd.f32 %v2191, %v2177
  %v2193 = vadd.f32 %v2192, %v2178
  %v2194 = vadd.f32 %v2193, %v2179
  %v2195 = vadd.f32 %v2194, %v2180
  %v2196 = vadd.f32 %v2195, %v2181
  %v2197 = vadd.f32 %v2196, %v2182
  %v2198 = vadd.f32 %v2197, %v2183
  %v2199 = vrot.slane %v2198, 4
  %v2200 = vadd.f32 %v2198, %v2199
  %v2201 = vrot.slane %v2200, 2
  %v2202 = vadd.f32 %v2200, %v2201
  %v2203 = vrot.slane %v2202, 1
  %v2204 = vadd.f32 %v2202, %v2203
  %v2205 = vmul.f32 %v2204, 0.0078125
  %v2206 = vmul.f32 %v2167, %v2167
  %v2207 = vsub.f32 %v2205, %v2206
  %v2208 = vmax.f32 %v2207, 0.0
  %v2209 = vsub.f32 %v2130, %v2167
  %v2210 = vsub.f32 %v2131, %v2167
  %v2211 = vsub.f32 %v2132, %v2167
  %v2212 = vsub.f32 %v2133, %v2167
  %v2213 = vsub.f32 %v2134, %v2167
  %v2214 = vsub.f32 %v2135, %v2167
  %v2215 = vsub.f32 %v2136, %v2167
  %v2216 = vsub.f32 %v2137, %v2167
  %v2217 = vsub.f32 %v2138, %v2167
  %v2218 = vsub.f32 %v2139, %v2167
  %v2219 = vsub.f32 %v2140, %v2167
  %v2220 = vsub.f32 %v2141, %v2167
  %v2221 = vsub.f32 %v2142, %v2167
  %v2222 = vsub.f32 %v2143, %v2167
  %v2223 = vsub.f32 %v2144, %v2167
  %v2224 = vsub.f32 %v2145, %v2167
  %v2225 = vadd.f32 %v2208, 1e-05
  %v2226 = vrsqrt.pop %v2225
  %v2227 = vmul.f32 %v2209, %v2226
  %v2228 = vmul.f32 %v2210, %v2226
  %v2229 = vmul.f32 %v2211, %v2226
  %v2230 = vmul.f32 %v2212, %v2226
  %v2231 = vmul.f32 %v2213, %v2226
  %v2232 = vmul.f32 %v2214, %v2226
  %v2233 = vmul.f32 %v2215, %v2226
  %v2234 = vmul.f32 %v2216, %v2226
  %v2235 = vmul.f32 %v2217, %v2226
  %v2236 = vmul.f32 %v2218, %v2226
  %v2237 = vmul.f32 %v2219, %v2226
  %v2238 = vmul.f32 %v2220, %v2226
  %v2239 = vmul.f32 %v2221, %v2226
  %v2240 = vmul.f32 %v2222, %v2226
  %v2241 = vmul.f32 %v2223, %v2226
  %v2242 = vmul.f32 %v2224, %v2226
  %v2243 = vlaneseq
  %v2244 = vshrl.u32 %v2243, 7
  %v2245 = vsub.s32 0, %v2244
  %v2246 = vrot.slane %v23, %v2245
  %v2247 = vmul.f32 %v2227, %v2246
  %v2248 = vmul.f32 %v2228, %v2246
  %v2249 = vmul.f32 %v2229, %v2246
  %v2250 = vmul.f32 %v2230, %v2246
  %v2251 = vmul.f32 %v2231, %v2246
  %v2252 = vmul.f32 %v2232, %v2246
  %v2253 = vmul.f32 %v2233, %v2246
  %v2254 = vmul.f32 %v2234, %v2246
  %v2255 = vmul.f32 %v2235, %v2246
  %v2256 = vmul.f32 %v2236, %v2246
  %v2257 = vmul.f32 %v2237, %v2246
  %v2258 = vmul.f32 %v2238, %v2246
  %v2259 = vmul.f32 %v2239, %v2246
  %v2260 = vmul.f32 %v2240, %v2246
  %v2261 = vmul.f32 %v2241, %v2246
  %v2262 = vmul.f32 %v2242, %v2246
  %v2263 = vlaneseq
  %v2264 = vshrl.u32 %v2263, 7
  %v2265 = vsub.s32 0, %v2264
  %v2266 = vrot.slane %v24, %v2265
  %v2267 = vadd.f32 %v2247, %v2266
  %v2268 = vadd.f32 %v2248, %v2266
  %v2269 = vadd.f32 %v2249, %v2266
  %v2270 = vadd.f32 %v2250, %v2266
  %v2271 = vadd.f32 %v2251, %v2266
  %v2272 = vadd.f32 %v2252, %v2266
  %v2273 = vadd.f32 %v2253, %v2266
  %v2274 = vadd.f32 %v2254, %v2266
  %v2275 = vadd.f32 %v2255, %v2266
  %v2276 = vadd.f32 %v2256, %v2266
  %v2277 = vadd.f32 %v2257, %v2266
  %v2278 = vadd.f32 %v2258, %v2266
  %v2279 = vadd.f32 %v2259, %v2266
  %v2280 = vadd.f32 %v2260, %v2266
  %v2281 = vadd.f32 %v2261, %v2266
  %v2282 = vadd.f32 %v2262, %v2266
  %v2283 = vld [vmem:[%s0] sm:$0xf]
  %v2284 = vld [vmem:[%s0 + $0x4] sm:$0xf]
  %v2285 = vld [vmem:[%s0 + $0x8] sm:$0xf]
  %v2286 = vld [vmem:[%s0 + $0xc] sm:$0xf]
  %v2287 = vld [vmem:[%s0 + $0x10] sm:$0xf]
  %v2288 = vld [vmem:[%s0 + $0x14] sm:$0xf]
  %v2289 = vld [vmem:[%s0 + $0x18] sm:$0xf]
  %v2290 = vld [vmem:[%s0 + $0x1c] sm:$0xf]
  %v2291 = vld [vmem:[%s0 + $0x20] sm:$0xf]
  %v2292 = vld [vmem:[%s0 + $0x24] sm:$0xf]
  %v2293 = vld [vmem:[%s0 + $0x28] sm:$0xf]
  %v2294 = vld [vmem:[%s0 + $0x2c] sm:$0xf]
  %v2295 = vld [vmem:[%s0 + $0x30] sm:$0xf]
  %v2296 = vld [vmem:[%s0 + $0x34] sm:$0xf]
  %v2297 = vld [vmem:[%s0 + $0x38] sm:$0xf]
  %v2298 = vld [vmem:[%s0 + $0x3c] sm:$0xf]
  %v2299 = vld [vmem:[%s3] sm:$0xf]
  %v2300 = vld [vmem:[%s3 + $0x4] sm:$0xf]
  %v2301 = vld [vmem:[%s3 + $0x8] sm:$0xf]
  %v2302 = vld [vmem:[%s3 + $0xc] sm:$0xf]
  %v2303 = vld [vmem:[%s3 + $0x10] sm:$0xf]
  %v2304 = vld [vmem:[%s3 + $0x14] sm:$0xf]
  %v2305 = vld [vmem:[%s3 + $0x18] sm:$0xf]
  %v2306 = vld [vmem:[%s3 + $0x1c] sm:$0xf]
  %v2307 = vld [vmem:[%s3 + $0x20] sm:$0xf]
  %v2308 = vld [vmem:[%s3 + $0x24] sm:$0xf]
  %v2309 = vld [vmem:[%s3 + $0x28] sm:$0xf]
  %v2310 = vld [vmem:[%s3 + $0x2c] sm:$0xf]
  %v2311 = vld [vmem:[%s3 + $0x30] sm:$0xf]
  %v2312 = vld [vmem:[%s3 + $0x34] sm:$0xf]
  %v2313 = vld [vmem:[%s3 + $0x38] sm:$0xf]
  %v2314 = vld [vmem:[%s3 + $0x3c] sm:$0xf]
  %v2331 = vunpack.c.l.b16 %v2283
  %v2332 = vunpack.c.l.b16 %v2284
  %v2333 = vunpack.c.l.b16 %v2285
  %v2334 = vunpack.c.l.b16 %v2286
  %v2335 = vunpack.c.l.b16 %v2287
  %v2336 = vunpack.c.l.b16 %v2288
  %v2337 = vunpack.c.l.b16 %v2289
  %v2338 = vunpack.c.l.b16 %v2290
  %v2339 = vunpack.c.l.b16 %v2291
  %v2340 = vunpack.c.l.b16 %v2292
  %v2341 = vunpack.c.l.b16 %v2293
  %v2342 = vunpack.c.l.b16 %v2294
  %v2343 = vunpack.c.l.b16 %v2295
  %v2344 = vunpack.c.l.b16 %v2296
  %v2345 = vunpack.c.l.b16 %v2297
  %v2346 = vunpack.c.l.b16 %v2298
  %v2347 = vpack.c.b16 %v2332, %v2331
  %v2348 = vpack.c.b16 %v2334, %v2333
  %v2349 = vpack.c.b16 %v2336, %v2335
  %v2350 = vpack.c.b16 %v2338, %v2337
  %v2351 = vpack.c.b16 %v2340, %v2339
  %v2352 = vpack.c.b16 %v2342, %v2341
  %v2353 = vpack.c.b16 %v2344, %v2343
  %v2354 = vpack.c.b16 %v2346, %v2345
  %v2379 = vunpack.c.l.b16 %v2299
  %v2380 = vunpack.c.l.b16 %v2300
  %v2381 = vunpack.c.l.b16 %v2301
  %v2382 = vunpack.c.l.b16 %v2302
  %v2383 = vunpack.c.l.b16 %v2303
  %v2384 = vunpack.c.l.b16 %v2304
  %v2385 = vunpack.c.l.b16 %v2305
  %v2386 = vunpack.c.l.b16 %v2306
  %v2387 = vunpack.c.l.b16 %v2307
  %v2388 = vunpack.c.l.b16 %v2308
  %v2389 = vunpack.c.l.b16 %v2309
  %v2390 = vunpack.c.l.b16 %v2310
  %v2391 = vunpack.c.l.b16 %v2311
  %v2392 = vunpack.c.l.b16 %v2312
  %v2393 = vunpack.c.l.b16 %v2313
  %v2394 = vunpack.c.l.b16 %v2314
  %v2395 = vpack.c.b16 %v2380, %v2379
  %v2396 = vpack.c.b16 %v2382, %v2381
  %v2397 = vpack.c.b16 %v2384, %v2383
  %v2398 = vpack.c.b16 %v2386, %v2385
  %v2399 = vpack.c.b16 %v2388, %v2387
  %v2400 = vpack.c.b16 %v2390, %v2389
  %v2401 = vpack.c.b16 %v2392, %v2391
  %v2402 = vpack.c.b16 %v2394, %v2393
  %2411 = vmatprep.subr.bf16.mxu0 0
  %2412 = vmatpush1.bf16.msra.mxu0 %v2395
  %2413 = vmatprep.subr.bf16.mxu0 0
  %2414 = vmatpush1.bf16.msra.mxu0 %v2396
  %2415 = vmatprep.subr.bf16.mxu0 0
  %2416 = vmatpush1.bf16.msra.mxu0 %v2397
  %2417 = vmatprep.subr.bf16.mxu0 0
  %2418 = vmatpush1.bf16.msra.mxu0 %v2398
  %2419 = vmatprep.subr.bf16.mxu0 0
  %2420 = vmatpush1.bf16.msra.mxu0 %v2399
  %2421 = vmatprep.subr.bf16.mxu0 0
  %2422 = vmatpush1.bf16.msra.mxu0 %v2400
  %2423 = vmatprep.subr.bf16.mxu0 0
  %2424 = vmatpush1.bf16.msra.mxu0 %v2401
  %2425 = vmatprep.subr.bf16.mxu0 0
  %2426 = vmatpush1.bf16.msra.mxu0 %v2402
  %2427 = vmatprep.subr.bf16.mxu0 0
  %2428 = vmatpush1.bf16.msra.mxu0 0
  %2429 = vmatprep.subr.bf16.mxu0 0
  %2430 = vmatpush1.bf16.msra.mxu0 0
  %2431 = vmatprep.subr.bf16.mxu0 0
  %2432 = vmatpush1.bf16.msra.mxu0 0
  %2433 = vmatprep.subr.bf16.mxu0 0
  %2434 = vmatpush1.bf16.msra.mxu0 0
  %2435 = vmatprep.subr.bf16.mxu0 0
  %2436 = vmatpush1.bf16.msra.mxu0 0
  %2437 = vmatprep.subr.bf16.mxu0 0
  %2438 = vmatpush1.bf16.msra.mxu0 0
  %2439 = vmatprep.subr.bf16.mxu0 0
  %2440 = vmatpush1.bf16.msra.mxu0 0
  %2441 = vmatprep.subr.bf16.mxu0 0
  %2442 = vmatpush1.bf16.msra.mxu0 0
  %2443 = vmatprep.mubr.bf16.mxu0 0
  %2444 = vmatmul.mubr.bf16.gmra.mrb[0].mxu0 %v2347
  %v2445 = vpop.f32.mrb[0].mxu0
  %v2446 = vadd.f32 0.0, %v2445
  %v2447 = vpop.f32.mrb[0].mxu0
  %v2448 = vpop.f32.mrb[0].mxu0
  %v2449 = vadd.f32 0.0, %v2448
  %v2450 = vpop.f32.mrb[0].mxu0
  %2451 = vmatprep.mubr.bf16.mxu0 0
  %2452 = vmatmul.mubr.bf16.gmra.mrb[0].mxu0 %v2348
  %v2453 = vpop.f32.mrb[0].mxu0
  %v2454 = vadd.f32 0.0, %v2453
  %v2455 = vpop.f32.mrb[0].mxu0
  %v2456 = vpop.f32.mrb[0].mxu0
  %v2457 = vadd.f32 0.0, %v2456
  %v2458 = vpop.f32.mrb[0].mxu0
  %2459 = vmatprep.mubr.bf16.mxu0 0
  %2460 = vmatmul.mubr.bf16.gmra.mrb[0].mxu0 %v2349
  %v2461 = vpop.f32.mrb[0].mxu0
  %v2462 = vadd.f32 0.0, %v2461
  %v2463 = vpop.f32.mrb[0].mxu0
  %v2464 = vpop.f32.mrb[0].mxu0
  %v2465 = vadd.f32 0.0, %v2464
  %v2466 = vpop.f32.mrb[0].mxu0
  %2467 = vmatprep.mubr.bf16.mxu0 0
  %2468 = vmatmul.mubr.bf16.gmra.mrb[0].mxu0 %v2350
  %v2469 = vpop.f32.mrb[0].mxu0
  %v2470 = vadd.f32 0.0, %v2469
  %v2471 = vpop.f32.mrb[0].mxu0
  %v2472 = vpop.f32.mrb[0].mxu0
  %v2473 = vadd.f32 0.0, %v2472
  %v2474 = vpop.f32.mrb[0].mxu0
  %2475 = vmatprep.mubr.bf16.mxu0 0
  %2476 = vmatmul.mubr.bf16.gmra.mrb[0].mxu0 %v2351
  %v2477 = vpop.f32.mrb[0].mxu0
  %v2478 = vadd.f32 0.0, %v2477
  %v2479 = vpop.f32.mrb[0].mxu0
  %v2480 = vpop.f32.mrb[0].mxu0
  %v2481 = vadd.f32 0.0, %v2480
  %v2482 = vpop.f32.mrb[0].mxu0
  %2483 = vmatprep.mubr.bf16.mxu0 0
  %2484 = vmatmul.mubr.bf16.gmra.mrb[0].mxu0 %v2352
  %v2485 = vpop.f32.mrb[0].mxu0
  %v2486 = vadd.f32 0.0, %v2485
  %v2487 = vpop.f32.mrb[0].mxu0
  %v2488 = vpop.f32.mrb[0].mxu0
  %v2489 = vadd.f32 0.0, %v2488
  %v2490 = vpop.f32.mrb[0].mxu0
  %2491 = vmatprep.mubr.bf16.mxu0 0
  %2492 = vmatmul.mubr.bf16.gmra.mrb[0].mxu0 %v2353
  %v2493 = vpop.f32.mrb[0].mxu0
  %v2494 = vadd.f32 0.0, %v2493
  %v2495 = vpop.f32.mrb[0].mxu0
  %v2496 = vpop.f32.mrb[0].mxu0
  %v2497 = vadd.f32 0.0, %v2496
  %v2498 = vpop.f32.mrb[0].mxu0
  %2499 = vmatprep.mubr.bf16.mxu0 0
  %2500 = vmatmul.mubr.bf16.gmra.mrb[0].mxu0 %v2354
  %v2501 = vpop.f32.mrb[0].mxu0
  %v2502 = vadd.f32 0.0, %v2501
  %v2503 = vpop.f32.mrb[0].mxu0
  %v2504 = vpop.f32.mrb[0].mxu0
  %v2505 = vadd.f32 0.0, %v2504
  %v2506 = vpop.f32.mrb[0].mxu0
  %2507 = vdwg.mxu0
  %v2508 = vadd.f32 %v2446, %v2449
  %v2509 = vadd.f32 %v2508, %v2454
  %v2510 = vadd.f32 %v2509, %v2457
  %v2511 = vadd.f32 %v2510, %v2462
  %v2512 = vadd.f32 %v2511, %v2465
  %v2513 = vadd.f32 %v2512, %v2470
  %v2514 = vadd.f32 %v2513, %v2473
  %v2515 = vadd.f32 %v2514, %v2478
  %v2516 = vadd.f32 %v2515, %v2481
  %v2517 = vadd.f32 %v2516, %v2486
  %v2518 = vadd.f32 %v2517, %v2489
  %v2519 = vadd.f32 %v2518, %v2494
  %v2520 = vadd.f32 %v2519, %v2497
  %v2521 = vadd.f32 %v2520, %v2502
  %v2522 = vadd.f32 %v2521, %v2505
  %v2523 = vrot.slane %v2522, 4
  %v2524 = vadd.f32 %v2522, %v2523
  %v2525 = vrot.slane %v2524, 2
  %v2526 = vadd.f32 %v2524, %v2525
  %v2527 = vrot.slane %v2526, 1
  %v2528 = vadd.f32 %v2526, %v2527
  %v2529 = vmul.f32 %v2528, 0.0078125
  %v2530 = vmul.f32 %v2446, %v2446
  %v2531 = vmul.f32 %v2449, %v2449
  %v2532 = vmul.f32 %v2454, %v2454
  %v2533 = vmul.f32 %v2457, %v2457
  %v2534 = vmul.f32 %v2462, %v2462
  %v2535 = vmul.f32 %v2465, %v2465
  %v2536 = vmul.f32 %v2470, %v2470
  %v2537 = vmul.f32 %v2473, %v2473
  %v2538 = vmul.f32 %v2478, %v2478
  %v2539 = vmul.f32 %v2481, %v2481
  %v2540 = vmul.f32 %v2486, %v2486
  %v2541 = vmul.f32 %v2489, %v2489
  %v2542 = vmul.f32 %v2494, %v2494
  %v2543 = vmul.f32 %v2497, %v2497
  %v2544 = vmul.f32 %v2502, %v2502
  %v2545 = vmul.f32 %v2505, %v2505
  %v2546 = vadd.f32 %v2530, %v2531
  %v2547 = vadd.f32 %v2546, %v2532
  %v2548 = vadd.f32 %v2547, %v2533
  %v2549 = vadd.f32 %v2548, %v2534
  %v2550 = vadd.f32 %v2549, %v2535
  %v2551 = vadd.f32 %v2550, %v2536
  %v2552 = vadd.f32 %v2551, %v2537
  %v2553 = vadd.f32 %v2552, %v2538
  %v2554 = vadd.f32 %v2553, %v2539
  %v2555 = vadd.f32 %v2554, %v2540
  %v2556 = vadd.f32 %v2555, %v2541
  %v2557 = vadd.f32 %v2556, %v2542
  %v2558 = vadd.f32 %v2557, %v2543
  %v2559 = vadd.f32 %v2558, %v2544
  %v2560 = vadd.f32 %v2559, %v2545
  %v2561 = vrot.slane %v2560, 4
  %v2562 = vadd.f32 %v2560, %v2561
  %v2563 = vrot.slane %v2562, 2
  %v2564 = vadd.f32 %v2562, %v2563
  %v2565 = vrot.slane %v2564, 1
  %v2566 = vadd.f32 %v2564, %v2565
  %v2567 = vmul.f32 %v2566, 0.0078125
  %v2568 = vmul.f32 %v2529, %v2529
  %v2569 = vsub.f32 %v2567, %v2568
  %v2570 = vmax.f32 %v2569, 0.0
  %v2571 = vsub.f32 %v2446, %v2529
  %v2572 = vsub.f32 %v2449, %v2529
  %v2573 = vsub.f32 %v2454, %v2529
  %v2574 = vsub.f32 %v2457, %v2529
  %v2575 = vsub.f32 %v2462, %v2529
  %v2576 = vsub.f32 %v2465, %v2529
  %v2577 = vsub.f32 %v2470, %v2529
  %v2578 = vsub.f32 %v2473, %v2529
  %v2579 = vsub.f32 %v2478, %v2529
  %v2580 = vsub.f32 %v2481, %v2529
  %v2581 = vsub.f32 %v2486, %v2529
  %v2582 = vsub.f32 %v2489, %v2529
  %v2583 = vsub.f32 %v2494, %v2529
  %v2584 = vsub.f32 %v2497, %v2529
  %v2585 = vsub.f32 %v2502, %v2529
  %v2586 = vsub.f32 %v2505, %v2529
  %v2587 = vadd.f32 %v2570, 1e-05
  %v2588 = vrsqrt.pop %v2587
  %v2589 = vmul.f32 %v2571, %v2588
  %v2590 = vmul.f32 %v2572, %v2588
  %v2591 = vmul.f32 %v2573, %v2588
  %v2592 = vmul.f32 %v2574, %v2588
  %v2593 = vmul.f32 %v2575, %v2588
  %v2594 = vmul.f32 %v2576, %v2588
  %v2595 = vmul.f32 %v2577, %v2588
  %v2596 = vmul.f32 %v2578, %v2588
  %v2597 = vmul.f32 %v2579, %v2588
  %v2598 = vmul.f32 %v2580, %v2588
  %v2599 = vmul.f32 %v2581, %v2588
  %v2600 = vmul.f32 %v2582, %v2588
  %v2601 = vmul.f32 %v2583, %v2588
  %v2602 = vmul.f32 %v2584, %v2588
  %v2603 = vmul.f32 %v2585, %v2588
  %v2604 = vmul.f32 %v2586, %v2588
  %v2605 = vlaneseq
  %v2606 = vshrl.u32 %v2605, 7
  %v2607 = vsub.s32 0, %v2606
  %v2608 = vrot.slane %v25, %v2607
  %v2609 = vmul.f32 %v2589, %v2608
  %v2610 = vmul.f32 %v2590, %v2608
  %v2611 = vmul.f32 %v2591, %v2608
  %v2612 = vmul.f32 %v2592, %v2608
  %v2613 = vmul.f32 %v2593, %v2608
  %v2614 = vmul.f32 %v2594, %v2608
  %v2615 = vmul.f32 %v2595, %v2608
  %v2616 = vmul.f32 %v2596, %v2608
  %v2617 = vmul.f32 %v2597, %v2608
  %v2618 = vmul.f32 %v2598, %v2608
  %v2619 = vmul.f32 %v2599, %v2608
  %v2620 = vmul.f32 %v2600, %v2608
  %v2621 = vmul.f32 %v2601, %v2608
  %v2622 = vmul.f32 %v2602, %v2608
  %v2623 = vmul.f32 %v2603, %v2608
  %v2624 = vmul.f32 %v2604, %v2608
  %v2625 = vlaneseq
  %v2626 = vshrl.u32 %v2625, 7
  %v2627 = vsub.s32 0, %v2626
  %v2628 = vrot.slane %v26, %v2627
  %v2629 = vadd.f32 %v2609, %v2628
  %v2630 = vadd.f32 %v2610, %v2628
  %v2631 = vadd.f32 %v2611, %v2628
  %v2632 = vadd.f32 %v2612, %v2628
  %v2633 = vadd.f32 %v2613, %v2628
  %v2634 = vadd.f32 %v2614, %v2628
  %v2635 = vadd.f32 %v2615, %v2628
  %v2636 = vadd.f32 %v2616, %v2628
  %v2637 = vadd.f32 %v2617, %v2628
  %v2638 = vadd.f32 %v2618, %v2628
  %v2639 = vadd.f32 %v2619, %v2628
  %v2640 = vadd.f32 %v2620, %v2628
  %v2641 = vadd.f32 %v2621, %v2628
  %v2642 = vadd.f32 %v2622, %v2628
  %v2643 = vadd.f32 %v2623, %v2628
  %v2644 = vadd.f32 %v2624, %v2628
  %v2645 = vadd.f32 %v2267, %v2629
  %v2646 = vadd.f32 %v2268, %v2630
  %v2647 = vadd.f32 %v2269, %v2631
  %v2648 = vadd.f32 %v2270, %v2632
  %v2649 = vadd.f32 %v2271, %v2633
  %v2650 = vadd.f32 %v2272, %v2634
  %v2651 = vadd.f32 %v2273, %v2635
  %v2652 = vadd.f32 %v2274, %v2636
  %v2653 = vadd.f32 %v2275, %v2637
  %v2654 = vadd.f32 %v2276, %v2638
  %v2655 = vadd.f32 %v2277, %v2639
  %v2656 = vadd.f32 %v2278, %v2640
  %v2657 = vadd.f32 %v2279, %v2641
  %v2658 = vadd.f32 %v2280, %v2642
  %v2659 = vadd.f32 %v2281, %v2643
  %v2660 = vadd.f32 %v2282, %v2644
  %v2661 = vmax.f32 %v2645, 0.0
  %v2662 = vmax.f32 %v2646, 0.0
  %v2663 = vmax.f32 %v2647, 0.0
  %v2664 = vmax.f32 %v2648, 0.0
  %v2665 = vmax.f32 %v2649, 0.0
  %v2666 = vmax.f32 %v2650, 0.0
  %v2667 = vmax.f32 %v2651, 0.0
  %v2668 = vmax.f32 %v2652, 0.0
  %v2669 = vmax.f32 %v2653, 0.0
  %v2670 = vmax.f32 %v2654, 0.0
  %v2671 = vmax.f32 %v2655, 0.0
  %v2672 = vmax.f32 %v2656, 0.0
  %v2673 = vmax.f32 %v2657, 0.0
  %v2674 = vmax.f32 %v2658, 0.0
  %v2675 = vmax.f32 %v2659, 0.0
  %v2676 = vmax.f32 %v2660, 0.0
  %2677 = vst [vmem:[%s5] sm:$0xff] %v2661
  %2678 = vst [vmem:[%s5 + $0x8] sm:$0xff] %v2662
  %2679 = vst [vmem:[%s5 + $0x10] sm:$0xff] %v2663
  %2680 = vst [vmem:[%s5 + $0x18] sm:$0xff] %v2664
  %2681 = vst [vmem:[%s5 + $0x20] sm:$0xff] %v2665
  %2682 = vst [vmem:[%s5 + $0x28] sm:$0xff] %v2666
  %2683 = vst [vmem:[%s5 + $0x30] sm:$0xff] %v2667
  %2684 = vst [vmem:[%s5 + $0x38] sm:$0xff] %v2668
  %2685 = vst [vmem:[%s5 + $0x40] sm:$0xff] %v2669
  %2686 = vst [vmem:[%s5 + $0x48] sm:$0xff] %v2670
  %2687 = vst [vmem:[%s5 + $0x50] sm:$0xff] %v2671
  %2688 = vst [vmem:[%s5 + $0x58] sm:$0xff] %v2672
  %2689 = vst [vmem:[%s5 + $0x60] sm:$0xff] %v2673
  %2690 = vst [vmem:[%s5 + $0x68] sm:$0xff] %v2674
  %2691 = vst [vmem:[%s5 + $0x70] sm:$0xff] %v2675
  %2692 = vst [vmem:[%s5 + $0x78] sm:$0xff] %v2676
  // Predicated region
  $region22: #{standard_block_forward.1} parent=0 // pred_check
    _
  $region23: #{standard_block_forward.1} parent=0 // pred_check_branch
    %2694 = sbr.rel (0) target = $region25
  $region24: #{standard_block_forward.1} parent=0 // pred_region
    _
  $region25: #{standard_block_forward.1} parent=0 // pred_fallthru
    _
  // Predicated region
  $region26: #{standard_block_forward.1} parent=0 // pred_check
    _
  $region27: #{standard_block_forward.1} parent=0 // pred_check_branch
    %2696 = sbr.rel (0) target = $region29
  $region28: #{standard_block_forward.1} parent=0 // pred_region
    _
  $region29: #{standard_block_forward.1} parent=0 // pred_fallthru
    _

</llo_original>
